<compile_context>
chip_gen: v6e
topology: v6e:2x2x1
jax: 0.10.0
libtpu: 0.0.40
codegen_flags: <defaults>
</compile_context>

<pallas_src>
import functools
from math import ceil

import jax
import jax.numpy as jnp
from jax import lax
from jax.experimental import pallas as pl
from jax.experimental.pallas import tpu as pltpu

# ----------------------------- configuration ------------------------------
NUM_TREES = 8          # num_trees
DEPTH = 3              # depth of each tree
NUM_FEATURES = 16      # num_features
SPLIT_RATIO = 0.5      # split_ratio
HIDDEN = 32            # hidden
NUM_CLASSES = 4        # number of distinct labels the leaves can hold
BATCH = 64             # number of input rows

NUM_NODES = 2 ** (DEPTH - 1) - 1    # internal (gating) nodes, heap-indexed 1..NUM_NODES
NUM_LEAVES = 2 ** (DEPTH - 1)       # leaves, heap-indexed NUM_LEAVES..2*NUM_LEAVES-1
N_SEL = ceil(SPLIT_RATIO * NUM_FEATURES)
J = NUM_NODES * NUM_TREES           # total gating nodes in the forest (24)


# ------------------------------ Pallas kernel ------------------------------
def forest_kernel(x_ref, w1_ref, b1_ref, w2_ref, b2_ref, best_ref, preds_ref):
    n = x_ref.shape[0]
    T = NUM_TREES

    x = x_ref[...]                                            # (N, F) f32

    # ---- fused first layer: ONE MXU matmul for every (tree, node) MLP ----
    h = jnp.maximum(
        jnp.dot(x, w1_ref[...], preferred_element_type=jnp.float32)
        + b1_ref[...],
        0.0)                                                  # (N, J*H) = (64, 768)

    # ---- fused block-diagonal second layer: ONE MXU matmul -> gate logits ----
    # column j = node * T + t (node-major so each node's per-tree block is a
    # contiguous lane slice).  sigmoid omitted: route on the sign of the logit.
    logits = (jnp.dot(h, w2_ref[...], preferred_element_type=jnp.float32)
              + b2_ref[...])                                  # (N, J) = (64, 24)

    # ---- hard routing, vectorized over all trees (pure VPU selects) ----
    pos = jnp.zeros((n, T), jnp.int32)        # within-level position in the tree
    node_base = 0                             # first node index (0-based) at level
    for level in range(DEPTH - 1):
        level_size = 1 << level
        g_sel = logits[:, node_base * T:(node_base + 1) * T]  # (N, T)
        for k in range(1, level_size):
            col = logits[:, (node_base + k) * T:(node_base + k + 1) * T]
            g_sel = jnp.where(pos == k, col, g_sel)
        go_right = (g_sel < 0.0).astype(jnp.int32)            # logit >= 0 -> left
        pos = 2 * pos + go_right
        node_base += level_size
    leaf_pos = pos                                            # (N, T) in [0, LEAVES)

    # ---- leaf -> class label ("best" from populate_best) ----
    best = best_ref[...]                                      # (LEAVES, T) int32
    pred_t = jnp.zeros((n, T), jnp.int32)
    for l in range(NUM_LEAVES):
        pred_t = jnp.where(leaf_pos == l, best[l:l + 1, :], pred_t)   # (N, T)

    # ---- per-sample vote counts over trees, then mode ----
    class_ids = lax.broadcasted_iota(jnp.int32, (n, NUM_CLASSES), 1)
    counts = jnp.zeros((n, NUM_CLASSES), jnp.int32)
    for t in range(T):
        counts = counts + (class_ids == pred_t[:, t:t + 1]).astype(jnp.int32)

    # mode across trees: smallest class among the most frequent (torch.mode rule)
    max_count = jnp.max(counts, axis=1, keepdims=True)
    cand = jnp.where(counts == max_count, class_ids, jnp.int32(NUM_CLASSES))
    # NOTE: (N, 1) output is lane-sparse but tiny at BATCH=64; if batch scales
    # up, emit a (1, N) slab (N multiple of 128) and reshape in the wrapper.
    preds_ref[...] = jnp.min(cand, axis=1, keepdims=True)


# --------------------- parameter packing (layout plumbing) ------------------
def _pack_params(w1, b1, w2, b2, best):
    """Fuse per-(tree, node) params into lane-dense slabs for the kernel."""
    t, nodes, f, hdim = w1.shape
    j = nodes * t
    # h column index = (node * T + tree) * H + hh
    w1_all = jnp.transpose(w1, (2, 1, 0, 3)).reshape(f, j * hdim)      # (F, J*H)
    b1_all = jnp.transpose(b1, (2, 1, 0, 3)).reshape(1, j * hdim)      # (1, J*H)
    # block-diagonal second layer: row (jj*H + hh) , col jj
    w2r = jnp.transpose(w2[:, :, :, 0], (1, 0, 2)).reshape(j, hdim)    # (J, H)
    eye = jnp.eye(j, dtype=w2.dtype)                                   # (J, J)
    w2_bd = (w2r[:, :, None] * eye[:, None, :]).reshape(j * hdim, j)   # (J*H, J)
    b2_all = jnp.transpose(b2[:, 0, :], (1, 0)).reshape(1, j)          # (1, J)
    best_all = jnp.transpose(best[:, 0, :], (1, 0))                    # (LEAVES, T)
    return w1_all, b1_all, w2_bd, b2_all, best_all


# ------------------------------ host wrapper -------------------------------
@jax.jit
def deep_forest_forward(x, w1, b1, w2, b2, best):
    n, f = x.shape
    w1_all, b1_all, w2_bd, b2_all, best_all = _pack_params(w1, b1, w2, b2, best)
    jh = w1_all.shape[1]
    j = w2_bd.shape[1]

    preds = pl.pallas_call(
        forest_kernel,
        out_shape=jax.ShapeDtypeStruct((n, 1), jnp.int32),
        grid=(1,),                                   # single step: everything fused
        in_specs=[
            pl.BlockSpec((n, f), lambda i: (0, 0)),                     # x
            pl.BlockSpec((f, jh), lambda i: (0, 0)),                    # W1_all
            pl.BlockSpec((1, jh), lambda i: (0, 0)),                    # b1_all
            pl.BlockSpec((jh, j), lambda i: (0, 0)),                    # W2 block-diag
            pl.BlockSpec((1, j), lambda i: (0, 0)),                     # b2_all
            pl.BlockSpec((NUM_LEAVES, NUM_TREES), lambda i: (0, 0)),    # leaf labels
        ],
        out_specs=pl.BlockSpec((n, 1), lambda i: (0, 0)),
        compiler_params=pltpu.CompilerParams(
            dimension_semantics=("arbitrary",)),
    )(x, w1_all, b1_all, w2_bd, b2_all, best_all)
    return preds[:, 0]                               # (N,) int32, like th.mode(...)[0]


# --------------------- deterministic parameter creation ---------------------
def init_params(key):
    k_w1, k_b1, k_w2, k_b2, k_best, k_mask = jax.random.split(key, 6)

    w1 = 0.5 * jax.random.normal(
        k_w1, (NUM_TREES, NUM_NODES, NUM_FEATURES, HIDDEN), jnp.float32)
    b1 = 0.1 * jax.random.normal(
        k_b1, (NUM_TREES, NUM_NODES, 1, HIDDEN), jnp.float32)
    w2 = 0.5 * jax.random.normal(
        k_w2, (NUM_TREES, NUM_NODES, HIDDEN, 1), jnp.float32)
    b2 = 0.1 * jax.random.normal(
        k_b2, (NUM_TREES, 1, NUM_NODES), jnp.float32)

    # gen_tree_features: each (tree, node) only sees a random subset of
    # ceil(split_ratio * num_features) features.  Implemented by zeroing the
    # W1 rows of non-selected features.
    perm_keys = jax.random.split(k_mask, NUM_TREES * NUM_NODES)
    perms = jax.vmap(lambda k: jax.random.permutation(k, NUM_FEATURES))(perm_keys)
    selected = perms[:, :N_SEL]                                  # (T*NODES, n_sel)
    mask = (selected[:, :, None] == jnp.arange(NUM_FEATURES)[None, None, :]).any(axis=1)
    mask = mask.reshape(NUM_TREES, NUM_NODES, NUM_FEATURES).astype(jnp.float32)
    w1 = w1 * mask[:, :, :, None]

    # populate_best: the class label stored at each leaf (synthetic here).
    best = jax.random.randint(
        k_best, (NUM_TREES, 1, NUM_LEAVES), 0, NUM_CLASSES, jnp.int32)

    return w1, b1, w2, b2, best


# ----------------------------------- main -----------------------------------
if __name__ == "__main__":
    key = jax.random.PRNGKey(0)
    k_x, k_params = jax.random.split(key)

    x = jax.random.normal(k_x, (BATCH, NUM_FEATURES), jnp.float32)
    w1, b1, w2, b2, best = init_params(k_params)

    preds = deep_forest_forward(x, w1, b1, w2, b2, best)
    jax.block_until_ready(preds)

    assert preds.shape == (BATCH,)
    assert preds.dtype == jnp.int32
    assert bool(jnp.all((preds >= 0) & (preds < NUM_CLASSES)))
    print("KERNEL_OK")
</pallas_src>

<mosaic_0001>
module attributes {stable_mosaic.version = 11 : i64} {
  func.func @forest_kernel(%arg0: i32, %arg1: memref<64x16xf32, #tpu.memory_space<vmem>>, %arg2: memref<16x768xf32, #tpu.memory_space<vmem>>, %arg3: memref<1x768xf32, #tpu.memory_space<vmem>>, %arg4: memref<768x24xf32, #tpu.memory_space<vmem>>, %arg5: memref<1x24xf32, #tpu.memory_space<vmem>>, %arg6: memref<4x8xi32, #tpu.memory_space<vmem>>, %arg7: memref<64x1xi32, #tpu.memory_space<vmem>>) attributes {dimension_semantics = [#tpu.dimension_semantics<arbitrary>], iteration_bounds = array<i64: 1>, scalar_prefetch = 0 : i64, scratch_operands = 0 : i64, tpu.core_type = #tpu.core_type<tc>, window_params = [{pipeline_mode = #tpu.pipeline_mode<synchronous>, transform_indices = @transform_0, window_bounds = array<i64: 64, 16>}, {pipeline_mode = #tpu.pipeline_mode<synchronous>, transform_indices = @transform_1, window_bounds = array<i64: 16, 768>}, {pipeline_mode = #tpu.pipeline_mode<synchronous>, transform_indices = @transform_2, window_bounds = array<i64: 1, 768>}, {pipeline_mode = #tpu.pipeline_mode<synchronous>, transform_indices = @transform_3, window_bounds = array<i64: 768, 24>}, {pipeline_mode = #tpu.pipeline_mode<synchronous>, transform_indices = @transform_4, window_bounds = array<i64: 1, 24>}, {pipeline_mode = #tpu.pipeline_mode<synchronous>, transform_indices = @transform_5, window_bounds = array<i64: 4, 8>}, {pipeline_mode = #tpu.pipeline_mode<synchronous>, transform_indices = @transform_6, window_bounds = array<i64: 64, 1>}]} {
    %c0 = arith.constant 0 : index
    %c0_0 = arith.constant 0 : index
    %0 = vector.load %arg1[%c0, %c0_0] : memref<64x16xf32, #tpu.memory_space<vmem>>, vector<64x16xf32>
    %c0_1 = arith.constant 0 : index
    %c0_2 = arith.constant 0 : index
    %1 = vector.load %arg2[%c0_1, %c0_2] : memref<16x768xf32, #tpu.memory_space<vmem>>, vector<16x768xf32>
    %cst = arith.constant dense<0.000000e+00> : vector<64x768xf32>
    %2 = tpu.matmul %0, %1, %cst {dimension_numbers = #tpu.dot_dimension_numbers<[1], [0], [0], [1], [0, 0, 1, 1], [], []>} : vector<64x16xf32>, vector<16x768xf32>, vector<64x768xf32> -> vector<64x768xf32>
    %c0_3 = arith.constant 0 : index
    %c0_4 = arith.constant 0 : index
    %3 = vector.load %arg3[%c0_3, %c0_4] : memref<1x768xf32, #tpu.memory_space<vmem>>, vector<1x768xf32>
    %4 = vector.broadcast %3 : vector<1x768xf32> to vector<64x768xf32>
    %5 = arith.addf %2, %4 : vector<64x768xf32>
    %cst_5 = arith.constant 0.000000e+00 : f32
    %6 = vector.broadcast %cst_5 : f32 to vector<64x768xf32>
    %7 = arith.maximumf %5, %6 : vector<64x768xf32>
    %c0_6 = arith.constant 0 : index
    %c0_7 = arith.constant 0 : index
    %8 = vector.load %arg4[%c0_6, %c0_7] : memref<768x24xf32, #tpu.memory_space<vmem>>, vector<768x24xf32>
    %cst_8 = arith.constant dense<0.000000e+00> : vector<64x24xf32>
    %9 = tpu.matmul %7, %8, %cst_8 {dimension_numbers = #tpu.dot_dimension_numbers<[1], [0], [0], [1], [0, 0, 1, 1], [], []>} : vector<64x768xf32>, vector<768x24xf32>, vector<64x24xf32> -> vector<64x24xf32>
    %c0_9 = arith.constant 0 : index
    %c0_10 = arith.constant 0 : index
    %10 = vector.load %arg5[%c0_9, %c0_10] : memref<1x24xf32, #tpu.memory_space<vmem>>, vector<1x24xf32>
    %11 = vector.broadcast %10 : vector<1x24xf32> to vector<64x24xf32>
    %12 = arith.addf %9, %11 : vector<64x24xf32>
    %c0_i32 = arith.constant 0 : i32
    %13 = vector.broadcast %c0_i32 : i32 to vector<64x8xi32>
    %14 = vector.extract_strided_slice %12 {offsets = [0, 0], sizes = [64, 8], strides = [1, 1]} : vector<64x24xf32> to vector<64x8xf32>
    %cst_11 = arith.constant 0.000000e+00 : f32
    %15 = vector.broadcast %cst_11 : f32 to vector<64x8xf32>
    %16 = arith.cmpf olt, %14, %15 : vector<64x8xf32>
    %17 = arith.extui %16 : vector<64x8xi1> to vector<64x8xi32>
    %c2_i32 = arith.constant 2 : i32
    %18 = vector.broadcast %c2_i32 : i32 to vector<64x8xi32>
    %19 = arith.muli %18, %13 : vector<64x8xi32>
    %20 = arith.addi %19, %17 : vector<64x8xi32>
    %21 = vector.extract_strided_slice %12 {offsets = [0, 8], sizes = [64, 8], strides = [1, 1]} : vector<64x24xf32> to vector<64x8xf32>
    %22 = vector.extract_strided_slice %12 {offsets = [0, 16], sizes = [64, 8], strides = [1, 1]} : vector<64x24xf32> to vector<64x8xf32>
    %c1_i32 = arith.constant 1 : i32
    %23 = vector.broadcast %c1_i32 : i32 to vector<64x8xi32>
    %24 = arith.cmpi eq, %20, %23 : vector<64x8xi32>
    %25 = arith.select %24, %22, %21 : vector<64x8xi1>, vector<64x8xf32>
    %cst_12 = arith.constant 0.000000e+00 : f32
    %26 = vector.broadcast %cst_12 : f32 to vector<64x8xf32>
    %27 = arith.cmpf olt, %25, %26 : vector<64x8xf32>
    %28 = arith.extui %27 : vector<64x8xi1> to vector<64x8xi32>
    %c2_i32_13 = arith.constant 2 : i32
    %29 = vector.broadcast %c2_i32_13 : i32 to vector<64x8xi32>
    %30 = arith.muli %29, %20 : vector<64x8xi32>
    %31 = arith.addi %30, %28 : vector<64x8xi32>
    %c0_14 = arith.constant 0 : index
    %c0_15 = arith.constant 0 : index
    %32 = vector.load %arg6[%c0_14, %c0_15] : memref<4x8xi32, #tpu.memory_space<vmem>>, vector<4x8xi32>
    %c0_i32_16 = arith.constant 0 : i32
    %33 = vector.broadcast %c0_i32_16 : i32 to vector<64x8xi32>
    %c0_i32_17 = arith.constant 0 : i32
    %34 = vector.broadcast %c0_i32_17 : i32 to vector<64x8xi32>
    %35 = arith.cmpi eq, %31, %34 : vector<64x8xi32>
    %36 = vector.extract_strided_slice %32 {offsets = [0, 0], sizes = [1, 8], strides = [1, 1]} : vector<4x8xi32> to vector<1x8xi32>
    %37 = vector.shape_cast %36 : vector<1x8xi32> to vector<1x8xi32>
    %38 = vector.broadcast %37 : vector<1x8xi32> to vector<64x8xi32>
    %39 = arith.select %35, %38, %33 : vector<64x8xi1>, vector<64x8xi32>
    %c1_i32_18 = arith.constant 1 : i32
    %40 = vector.broadcast %c1_i32_18 : i32 to vector<64x8xi32>
    %41 = arith.cmpi eq, %31, %40 : vector<64x8xi32>
    %42 = vector.extract_strided_slice %32 {offsets = [1, 0], sizes = [1, 8], strides = [1, 1]} : vector<4x8xi32> to vector<1x8xi32>
    %43 = vector.shape_cast %42 : vector<1x8xi32> to vector<1x8xi32>
    %44 = vector.broadcast %43 : vector<1x8xi32> to vector<64x8xi32>
    %45 = arith.select %41, %44, %39 : vector<64x8xi1>, vector<64x8xi32>
    %c2_i32_19 = arith.constant 2 : i32
    %46 = vector.broadcast %c2_i32_19 : i32 to vector<64x8xi32>
    %47 = arith.cmpi eq, %31, %46 : vector<64x8xi32>
    %48 = vector.extract_strided_slice %32 {offsets = [2, 0], sizes = [1, 8], strides = [1, 1]} : vector<4x8xi32> to vector<1x8xi32>
    %49 = vector.shape_cast %48 : vector<1x8xi32> to vector<1x8xi32>
    %50 = vector.broadcast %49 : vector<1x8xi32> to vector<64x8xi32>
    %51 = arith.select %47, %50, %45 : vector<64x8xi1>, vector<64x8xi32>
    %c3_i32 = arith.constant 3 : i32
    %52 = vector.broadcast %c3_i32 : i32 to vector<64x8xi32>
    %53 = arith.cmpi eq, %31, %52 : vector<64x8xi32>
    %54 = vector.extract_strided_slice %32 {offsets = [3, 0], sizes = [1, 8], strides = [1, 1]} : vector<4x8xi32> to vector<1x8xi32>
    %55 = vector.shape_cast %54 : vector<1x8xi32> to vector<1x8xi32>
    %56 = vector.broadcast %55 : vector<1x8xi32> to vector<64x8xi32>
    %57 = arith.select %53, %56, %51 : vector<64x8xi1>, vector<64x8xi32>
    %58 = tpu.iota {dimensions = array<i32: 1>} : vector<64x4xi32>
    %c0_i32_20 = arith.constant 0 : i32
    %59 = vector.broadcast %c0_i32_20 : i32 to vector<64x4xi32>
    %60 = vector.extract_strided_slice %57 {offsets = [0, 0], sizes = [64, 1], strides = [1, 1]} : vector<64x8xi32> to vector<64x1xi32>
    %61 = vector.broadcast %60 : vector<64x1xi32> to vector<64x4xi32>
    %62 = arith.cmpi eq, %58, %61 : vector<64x4xi32>
    %63 = arith.extui %62 : vector<64x4xi1> to vector<64x4xi32>
    %64 = arith.addi %59, %63 : vector<64x4xi32>
    %65 = vector.extract_strided_slice %57 {offsets = [0, 1], sizes = [64, 1], strides = [1, 1]} : vector<64x8xi32> to vector<64x1xi32>
    %66 = vector.broadcast %65 : vector<64x1xi32> to vector<64x4xi32>
    %67 = arith.cmpi eq, %58, %66 : vector<64x4xi32>
    %68 = arith.extui %67 : vector<64x4xi1> to vector<64x4xi32>
    %69 = arith.addi %64, %68 : vector<64x4xi32>
    %70 = vector.extract_strided_slice %57 {offsets = [0, 2], sizes = [64, 1], strides = [1, 1]} : vector<64x8xi32> to vector<64x1xi32>
    %71 = vector.broadcast %70 : vector<64x1xi32> to vector<64x4xi32>
    %72 = arith.cmpi eq, %58, %71 : vector<64x4xi32>
    %73 = arith.extui %72 : vector<64x4xi1> to vector<64x4xi32>
    %74 = arith.addi %69, %73 : vector<64x4xi32>
    %75 = vector.extract_strided_slice %57 {offsets = [0, 3], sizes = [64, 1], strides = [1, 1]} : vector<64x8xi32> to vector<64x1xi32>
    %76 = vector.broadcast %75 : vector<64x1xi32> to vector<64x4xi32>
    %77 = arith.cmpi eq, %58, %76 : vector<64x4xi32>
    %78 = arith.extui %77 : vector<64x4xi1> to vector<64x4xi32>
    %79 = arith.addi %74, %78 : vector<64x4xi32>
    %80 = vector.extract_strided_slice %57 {offsets = [0, 4], sizes = [64, 1], strides = [1, 1]} : vector<64x8xi32> to vector<64x1xi32>
    %81 = vector.broadcast %80 : vector<64x1xi32> to vector<64x4xi32>
    %82 = arith.cmpi eq, %58, %81 : vector<64x4xi32>
    %83 = arith.extui %82 : vector<64x4xi1> to vector<64x4xi32>
    %84 = arith.addi %79, %83 : vector<64x4xi32>
    %85 = vector.extract_strided_slice %57 {offsets = [0, 5], sizes = [64, 1], strides = [1, 1]} : vector<64x8xi32> to vector<64x1xi32>
    %86 = vector.broadcast %85 : vector<64x1xi32> to vector<64x4xi32>
    %87 = arith.cmpi eq, %58, %86 : vector<64x4xi32>
    %88 = arith.extui %87 : vector<64x4xi1> to vector<64x4xi32>
    %89 = arith.addi %84, %88 : vector<64x4xi32>
    %90 = vector.extract_strided_slice %57 {offsets = [0, 6], sizes = [64, 1], strides = [1, 1]} : vector<64x8xi32> to vector<64x1xi32>
    %91 = vector.broadcast %90 : vector<64x1xi32> to vector<64x4xi32>
    %92 = arith.cmpi eq, %58, %91 : vector<64x4xi32>
    %93 = arith.extui %92 : vector<64x4xi1> to vector<64x4xi32>
    %94 = arith.addi %89, %93 : vector<64x4xi32>
    %95 = vector.extract_strided_slice %57 {offsets = [0, 7], sizes = [64, 1], strides = [1, 1]} : vector<64x8xi32> to vector<64x1xi32>
    %96 = vector.broadcast %95 : vector<64x1xi32> to vector<64x4xi32>
    %97 = arith.cmpi eq, %58, %96 : vector<64x4xi32>
    %98 = arith.extui %97 : vector<64x4xi1> to vector<64x4xi32>
    %99 = arith.addi %94, %98 : vector<64x4xi32>
    %cst_21 = arith.constant dense<-2147483648> : vector<64xi32>
    %100 = vector.multi_reduction <maxsi>, %99, %cst_21 [1] : vector<64x4xi32> to vector<64xi32>
    %101 = vector.shape_cast %100 : vector<64xi32> to vector<64x1xi32>
    %102 = vector.broadcast %101 : vector<64x1xi32> to vector<64x4xi32>
    %103 = arith.cmpi eq, %99, %102 : vector<64x4xi32>
    %c4_i32 = arith.constant 4 : i32
    %104 = vector.broadcast %c4_i32 : i32 to vector<64x4xi32>
    %105 = arith.select %103, %58, %104 : vector<64x4xi1>, vector<64x4xi32>
    %cst_22 = arith.constant dense<2147483647> : vector<64xi32>
    %106 = vector.multi_reduction <minsi>, %105, %cst_22 [1] : vector<64x4xi32> to vector<64xi32>
    %107 = vector.shape_cast %106 : vector<64xi32> to vector<64x1xi32>
    %c0_23 = arith.constant 0 : index
    %c0_24 = arith.constant 0 : index
    %108 = vector.load %arg7[%c0_23, %c0_24] : memref<64x1xi32, #tpu.memory_space<vmem>>, vector<64x1xi32>
    tpu.vector_store %arg7[%c0_23, %c0_24], %107 {strides = array<i32>} : memref<64x1xi32, #tpu.memory_space<vmem>>, vector<64x1xi32>,
    return
  }
  func.func @transform_0(%arg0: i32) -> (i32, i32) {
    %c0_i32 = arith.constant 0 : i32
    %c0_i32_0 = arith.constant 0 : i32
    %c0_i32_1 = arith.constant 0 : i32
    return %c0_i32, %c0_i32_0 : i32, i32
  }
  func.func @transform_1(%arg0: i32) -> (i32, i32) {
    %c0_i32 = arith.constant 0 : i32
    %c0_i32_0 = arith.constant 0 : i32
    %c0_i32_1 = arith.constant 0 : i32
    return %c0_i32, %c0_i32_0 : i32, i32
  }
  func.func @transform_2(%arg0: i32) -> (i32, i32) {
    %c0_i32 = arith.constant 0 : i32
    %c0_i32_0 = arith.constant 0 : i32
    %c0_i32_1 = arith.constant 0 : i32
    return %c0_i32, %c0_i32_0 : i32, i32
  }
  func.func @transform_3(%arg0: i32) -> (i32, i32) {
    %c0_i32 = arith.constant 0 : i32
    %c0_i32_0 = arith.constant 0 : i32
    %c0_i32_1 = arith.constant 0 : i32
    return %c0_i32, %c0_i32_0 : i32, i32
  }
  func.func @transform_4(%arg0: i32) -> (i32, i32) {
    %c0_i32 = arith.constant 0 : i32
    %c0_i32_0 = arith.constant 0 : i32
    %c0_i32_1 = arith.constant 0 : i32
    return %c0_i32, %c0_i32_0 : i32, i32
  }
  func.func @transform_5(%arg0: i32) -> (i32, i32) {
    %c0_i32 = arith.constant 0 : i32
    %c0_i32_0 = arith.constant 0 : i32
    %c0_i32_1 = arith.constant 0 : i32
    return %c0_i32, %c0_i32_0 : i32, i32
  }
  func.func @transform_6(%arg0: i32) -> (i32, i32) {
    %c0_i32 = arith.constant 0 : i32
    %c0_i32_0 = arith.constant 0 : i32
    %c0_i32_1 = arith.constant 0 : i32
    return %c0_i32, %c0_i32_0 : i32, i32
  }
}

</mosaic_0001>

<llo_original>
// kernel: deep_forest_forward.1
$region0: #{deep_forest_forward.1}
  #allocation0 [shape = 'u32[]', space=smem, size = 0x4, offset = 0x4, fixed_abs, tag = 'smem constant byte address 0x4 - core index']
  #allocation1 [shape = 'u32[144,128]{1,0:T(1,128)}', space=vmem, size = 0x12000, scoped, tag = 'internal scratch']
  %s0 = inlined_call_operand.vmem [shape: f32[64,16], index: 0, kind: input, shape index: {}]
  %s1 = inlined_call_operand.vmem [shape: f32[16,768], index: 1, kind: input, shape index: {}]
  %s2 = inlined_call_operand.vmem [shape: f32[1,768], index: 2, kind: input, shape index: {}]
  %s3 = inlined_call_operand.vmem [shape: f32[768,24], index: 3, kind: input, shape index: {}]
  %s4 = inlined_call_operand.vmem [shape: f32[1,24], index: 4, kind: input, shape index: {}]
  %s5 = inlined_call_operand.vmem [shape: s32[4,8], index: 5, kind: input, shape index: {}]
  %s6 = inlined_call_operand.vmem [shape: s32[64,1], index: 6, kind: output, shape index: {}]
  %s7 = sld [smem:[#allocation0]]
  $region34: #{deep_forest_forward.1} parent=0
    _
  %s9 = ssub.s32 1, %s7
  %s10 = scalar_select 0, %s9, %s7
  // Predicated region
  $region2: #{deep_forest_forward.1} parent=0 // pred_check
    _
  $region3: #{deep_forest_forward.1} parent=0 // pred_check_branch
    %12 = sbr.rel (0) target = $region5
  $region4: #{deep_forest_forward.1} parent=0 // pred_region
    _
  $region5: #{deep_forest_forward.1} parent=0 // pred_fallthru
    _
  // Predicated region
  $region6: #{deep_forest_forward.1} parent=0 // pred_check
    _
  $region7: #{deep_forest_forward.1} parent=0 // pred_check_branch
    %14 = sbr.rel (0) target = $region9
  $region8: #{deep_forest_forward.1} parent=0 // pred_region
    _
  $region9: #{deep_forest_forward.1} parent=0 // pred_fallthru
    _
  // Predicated region
  $region10: #{deep_forest_forward.1} parent=0 // pred_check
    _
  $region11: #{deep_forest_forward.1} parent=0 // pred_check_branch
    %16 = sbr.rel (0) target = $region13
  $region12: #{deep_forest_forward.1} parent=0 // pred_region
    _
  $region13: #{deep_forest_forward.1} parent=0 // pred_fallthru
    _
  // Predicated region
  $region14: #{deep_forest_forward.1} parent=0 // pred_check
    _
  $region15: #{deep_forest_forward.1} parent=0 // pred_check_branch
    %18 = sbr.rel (0) target = $region17
  $region16: #{deep_forest_forward.1} parent=0 // pred_region
    _
  $region17: #{deep_forest_forward.1} parent=0 // pred_fallthru
    _
  // Predicated region
  $region18: #{deep_forest_forward.1} parent=0 // pred_check
    _
  $region19: #{deep_forest_forward.1} parent=0 // pred_check_branch
    %20 = sbr.rel (0) target = $region21
  $region20: #{deep_forest_forward.1} parent=0 // pred_region
    _
  $region21: #{deep_forest_forward.1} parent=0 // pred_fallthru
    _
  // Predicated region
  $region22: #{deep_forest_forward.1} parent=0 // pred_check
    _
  $region23: #{deep_forest_forward.1} parent=0 // pred_check_branch
    %22 = sbr.rel (0) target = $region25
  $region24: #{deep_forest_forward.1} parent=0 // pred_region
    _
  $region25: #{deep_forest_forward.1} parent=0 // pred_fallthru
    _
  %v23 = vld [vmem:[%s0] sm:$0xff]
  %v24 = vld [vmem:[%s0 + $0x8] sm:$0xff]
  %v25 = vld [vmem:[%s0 + $0x10] sm:$0xff]
  %v26 = vld [vmem:[%s0 + $0x18] sm:$0xff]
  %v27 = vld [vmem:[%s0 + $0x20] sm:$0xff]
  %v28 = vld [vmem:[%s0 + $0x28] sm:$0xff]
  %v29 = vld [vmem:[%s0 + $0x30] sm:$0xff]
  %v30 = vld [vmem:[%s0 + $0x38] sm:$0xff]
  %v31 = vld [vmem:[%s1] sm:$0xff]
  %v32 = vld [vmem:[%s1 + $0x8] sm:$0xff]
  %v33 = vld [vmem:[%s1 + $0x10] sm:$0xff]
  %v34 = vld [vmem:[%s1 + $0x18] sm:$0xff]
  %v35 = vld [vmem:[%s1 + $0x20] sm:$0xff]
  %v36 = vld [vmem:[%s1 + $0x28] sm:$0xff]
  %v37 = vld [vmem:[%s1 + $0x30] sm:$0xff]
  %v38 = vld [vmem:[%s1 + $0x38] sm:$0xff]
  %v39 = vld [vmem:[%s1 + $0x40] sm:$0xff]
  %v40 = vld [vmem:[%s1 + $0x48] sm:$0xff]
  %v41 = vld [vmem:[%s1 + $0x50] sm:$0xff]
  %v42 = vld [vmem:[%s1 + $0x58] sm:$0xff]
  %v43 = vld [vmem:[%s2] sm:$0x3f]
  %v45 = vlaneseq
  %v46 = vshrl.u32 %v45, 7
  %v47 = vsub.s32 0, %v46
  %v48 = vrot.slane %v43, %v47
  %v49 = vlaneseq
  %v50 = vshrl.u32 %v49, 7
  %v51 = vsub.s32 1, %v50
  %v52 = vrot.slane %v43, %v51
  %v53 = vlaneseq
  %v54 = vshrl.u32 %v53, 7
  %v55 = vsub.s32 2, %v54
  %v56 = vrot.slane %v43, %v55
  %v57 = vlaneseq
  %v58 = vshrl.u32 %v57, 7
  %v59 = vsub.s32 3, %v58
  %v60 = vrot.slane %v43, %v59
  %v61 = vlaneseq
  %v62 = vshrl.u32 %v61, 7
  %v63 = vsub.s32 4, %v62
  %v64 = vrot.slane %v43, %v63
  %v65 = vlaneseq
  %v66 = vshrl.u32 %v65, 7
  %v67 = vsub.s32 5, %v66
  %v68 = vrot.slane %v43, %v67
  %vm75 = vcmask 130048
  %v77 = vsel %vm75, %v23, 0
  %v80 = vsel %vm75, %v24, 0
  %v83 = vsel %vm75, %v25, 0
  %v86 = vsel %vm75, %v26, 0
  %v89 = vsel %vm75, %v27, 0
  %v92 = vsel %vm75, %v28, 0
  %v95 = vsel %vm75, %v29, 0
  %v98 = vsel %vm75, %v30, 0
  %100 = vmatprep.subr.mxu0 0.0
  %101 = vmatpush1.msra.mxu0 0.0
  %102 = vmatprep.subr.mxu0 0.0
  %103 = vmatpush1.msra.mxu0 0.0
  %104 = vmatprep.subr.mxu0 0.0
  %105 = vmatpush1.msra.mxu0 0.0
  %106 = vmatprep.subr.mxu0 0.0
  %107 = vmatpush1.msra.mxu0 0.0
  %108 = vmatprep.subr.mxu0 0.0
  %109 = vmatpush1.msra.mxu0 0.0
  %110 = vmatprep.subr.mxu0 0.0
  %111 = vmatpush1.msra.mxu0 0.0
  %112 = vmatprep.subr.mxu0 0.0
  %113 = vmatpush1.msra.mxu0 0.0
  %114 = vmatprep.subr.mxu0 0.0
  %115 = vmatpush1.msra.mxu0 0.0
  %116 = vmatprep.subr.mxu0 0.0
  %117 = vmatpush1.msra.mxu0 0.0
  %118 = vmatprep.subr.mxu0 0.0
  %119 = vmatpush1.msra.mxu0 0.0
  %120 = vmatprep.subr.mxu0 0.0
  %121 = vmatpush1.msra.mxu0 0.0
  %122 = vmatprep.subr.mxu0 0.0
  %123 = vmatpush1.msra.mxu0 0.0
  %124 = vmatprep.subr.mxu0 0.0
  %125 = vmatpush1.msra.mxu0 0.0
  %126 = vmatprep.subr.mxu0 0.0
  %127 = vmatpush1.msra.mxu0 0.0
  %128 = vmatprep.subr.mxu0 %v38
  %129 = vmatpush1.msra.mxu0 %v37
  %130 = vmatprep.subr.mxu0 %v32
  %131 = vmatpush1.msra.mxu0 %v31
  %132 = vmatprep.subr.mxu0 0.0
  %133 = vmatpush2.msra.mxu0 0.0
  %134 = vmatprep.subr.mxu0 0.0
  %135 = vmatpush2.msra.mxu0 0.0
  %136 = vmatprep.subr.mxu0 0.0
  %137 = vmatpush2.msra.mxu0 0.0
  %138 = vmatprep.subr.mxu0 0.0
  %139 = vmatpush2.msra.mxu0 0.0
  %140 = vmatprep.subr.mxu0 0.0
  %141 = vmatpush2.msra.mxu0 0.0
  %142 = vmatprep.subr.mxu0 0.0
  %143 = vmatpush2.msra.mxu0 0.0
  %144 = vmatprep.subr.mxu0 0.0
  %145 = vmatpush2.msra.mxu0 0.0
  %146 = vmatprep.subr.mxu0 0.0
  %147 = vmatpush2.msra.mxu0 0.0
  %148 = vmatprep.subr.mxu0 0.0
  %149 = vmatpush2.msra.mxu0 0.0
  %150 = vmatprep.subr.mxu0 0.0
  %151 = vmatpush2.msra.mxu0 0.0
  %152 = vmatprep.subr.mxu0 0.0
  %153 = vmatpush2.msra.mxu0 0.0
  %154 = vmatprep.subr.mxu0 0.0
  %155 = vmatpush2.msra.mxu0 0.0
  %156 = vmatprep.subr.mxu0 0.0
  %157 = vmatpush2.msra.mxu0 0.0
  %158 = vmatprep.subr.mxu0 0.0
  %159 = vmatpush2.msra.mxu0 0.0
  %160 = vmatprep.subr.mxu0 0.0
  %161 = vmatpush2.msra.mxu0 0.0
  %162 = vmatprep.subr.mxu0 0.0
  %163 = vmatpush2.msra.mxu0 0.0
  %164 = vmatprep.mubr.f32.mxu0 0.0
  %165 = vmatmul.mubr.f32.gmra.mxu0 %v77
  %v166 = vpop.f32.mrf.mxu0
  %v167 = vadd.f32 %v48, %v166
  %v168 = vpop.f32.mrf.mxu0
  %v169 = vadd.f32 %v52, %v168
  %170 = vmatprep.mubr.f32.mxu0 0.0
  %171 = vmatmul.mubr.f32.gmra.mxu0 %v80
  %v172 = vpop.f32.mrf.mxu0
  %v173 = vadd.f32 %v48, %v172
  %v174 = vpop.f32.mrf.mxu0
  %v175 = vadd.f32 %v52, %v174
  %176 = vmatprep.mubr.f32.mxu0 0.0
  %177 = vmatmul.mubr.f32.gmra.mxu0 %v83
  %v178 = vpop.f32.mrf.mxu0
  %v179 = vadd.f32 %v48, %v178
  %v180 = vpop.f32.mrf.mxu0
  %v181 = vadd.f32 %v52, %v180
  %182 = vmatprep.mubr.f32.mxu0 0.0
  %183 = vmatmul.mubr.f32.gmra.mxu0 %v86
  %v184 = vpop.f32.mrf.mxu0
  %v185 = vadd.f32 %v48, %v184
  %v186 = vpop.f32.mrf.mxu0
  %v187 = vadd.f32 %v52, %v186
  %188 = vmatprep.mubr.f32.mxu0 0.0
  %189 = vmatmul.mubr.f32.gmra.mxu0 %v89
  %v190 = vpop.f32.mrf.mxu0
  %v191 = vadd.f32 %v48, %v190
  %v192 = vpop.f32.mrf.mxu0
  %v193 = vadd.f32 %v52, %v192
  %194 = vmatprep.mubr.f32.mxu0 0.0
  %195 = vmatmul.mubr.f32.gmra.mxu0 %v92
  %v196 = vpop.f32.mrf.mxu0
  %v197 = vadd.f32 %v48, %v196
  %v198 = vpop.f32.mrf.mxu0
  %v199 = vadd.f32 %v52, %v198
  %200 = vmatprep.mubr.f32.mxu0 0.0
  %201 = vmatmul.mubr.f32.gmra.mxu0 %v95
  %v202 = vpop.f32.mrf.mxu0
  %v203 = vadd.f32 %v48, %v202
  %v204 = vpop.f32.mrf.mxu0
  %v205 = vadd.f32 %v52, %v204
  %206 = vmatprep.mubr.f32.mxu0 0.0
  %207 = vmatmul.mubr.f32.gmra.mxu0 %v98
  %v208 = vpop.f32.mrf.mxu0
  %v209 = vadd.f32 %v48, %v208
  %v210 = vpop.f32.mrf.mxu0
  %v211 = vadd.f32 %v52, %v210
  %212 = vdwg.mxu0
  %213 = vmatprep.subr.mxu0 0.0
  %214 = vmatpush1.msra.mxu0 0.0
  %215 = vmatprep.subr.mxu0 0.0
  %216 = vmatpush1.msra.mxu0 0.0
  %217 = vmatprep.subr.mxu0 0.0
  %218 = vmatpush1.msra.mxu0 0.0
  %219 = vmatprep.subr.mxu0 0.0
  %220 = vmatpush1.msra.mxu0 0.0
  %221 = vmatprep.subr.mxu0 0.0
  %222 = vmatpush1.msra.mxu0 0.0
  %223 = vmatprep.subr.mxu0 0.0
  %224 = vmatpush1.msra.mxu0 0.0
  %225 = vmatprep.subr.mxu0 0.0
  %226 = vmatpush1.msra.mxu0 0.0
  %227 = vmatprep.subr.mxu0 0.0
  %228 = vmatpush1.msra.mxu0 0.0
  %229 = vmatprep.subr.mxu0 0.0
  %230 = vmatpush1.msra.mxu0 0.0
  %231 = vmatprep.subr.mxu0 0.0
  %232 = vmatpush1.msra.mxu0 0.0
  %233 = vmatprep.subr.mxu0 0.0
  %234 = vmatpush1.msra.mxu0 0.0
  %235 = vmatprep.subr.mxu0 0.0
  %236 = vmatpush1.msra.mxu0 0.0
  %237 = vmatprep.subr.mxu0 0.0
  %238 = vmatpush1.msra.mxu0 0.0
  %239 = vmatprep.subr.mxu0 0.0
  %240 = vmatpush1.msra.mxu0 0.0
  %241 = vmatprep.subr.mxu0 %v40
  %242 = vmatpush1.msra.mxu0 %v39
  %243 = vmatprep.subr.mxu0 %v34
  %244 = vmatpush1.msra.mxu0 %v33
  %245 = vmatprep.subr.mxu0 0.0
  %246 = vmatpush2.msra.mxu0 0.0
  %247 = vmatprep.subr.mxu0 0.0
  %248 = vmatpush2.msra.mxu0 0.0
  %249 = vmatprep.subr.mxu0 0.0
  %250 = vmatpush2.msra.mxu0 0.0
  %251 = vmatprep.subr.mxu0 0.0
  %252 = vmatpush2.msra.mxu0 0.0
  %253 = vmatprep.subr.mxu0 0.0
  %254 = vmatpush2.msra.mxu0 0.0
  %255 = vmatprep.subr.mxu0 0.0
  %256 = vmatpush2.msra.mxu0 0.0
  %257 = vmatprep.subr.mxu0 0.0
  %258 = vmatpush2.msra.mxu0 0.0
  %259 = vmatprep.subr.mxu0 0.0
  %260 = vmatpush2.msra.mxu0 0.0
  %261 = vmatprep.subr.mxu0 0.0
  %262 = vmatpush2.msra.mxu0 0.0
  %263 = vmatprep.subr.mxu0 0.0
  %264 = vmatpush2.msra.mxu0 0.0
  %265 = vmatprep.subr.mxu0 0.0
  %266 = vmatpush2.msra.mxu0 0.0
  %267 = vmatprep.subr.mxu0 0.0
  %268 = vmatpush2.msra.mxu0 0.0
  %269 = vmatprep.subr.mxu0 0.0
  %270 = vmatpush2.msra.mxu0 0.0
  %271 = vmatprep.subr.mxu0 0.0
  %272 = vmatpush2.msra.mxu0 0.0
  %273 = vmatprep.subr.mxu0 0.0
  %274 = vmatpush2.msra.mxu0 0.0
  %275 = vmatprep.subr.mxu0 0.0
  %276 = vmatpush2.msra.mxu0 0.0
  %277 = vmatprep.mubr.f32.mxu0 0.0
  %278 = vmatmul.mubr.f32.gmra.mxu0 %v77
  %v279 = vpop.f32.mrf.mxu0
  %v280 = vadd.f32 %v56, %v279
  %v281 = vpop.f32.mrf.mxu0
  %v282 = vadd.f32 %v60, %v281
  %283 = vmatprep.mubr.f32.mxu0 0.0
  %284 = vmatmul.mubr.f32.gmra.mxu0 %v80
  %v285 = vpop.f32.mrf.mxu0
  %v286 = vadd.f32 %v56, %v285
  %v287 = vpop.f32.mrf.mxu0
  %v288 = vadd.f32 %v60, %v287
  %289 = vmatprep.mubr.f32.mxu0 0.0
  %290 = vmatmul.mubr.f32.gmra.mxu0 %v83
  %v291 = vpop.f32.mrf.mxu0
  %v292 = vadd.f32 %v56, %v291
  %v293 = vpop.f32.mrf.mxu0
  %v294 = vadd.f32 %v60, %v293
  %295 = vmatprep.mubr.f32.mxu0 0.0
  %296 = vmatmul.mubr.f32.gmra.mxu0 %v86
  %v297 = vpop.f32.mrf.mxu0
  %v298 = vadd.f32 %v56, %v297
  %v299 = vpop.f32.mrf.mxu0
  %v300 = vadd.f32 %v60, %v299
  %301 = vmatprep.mubr.f32.mxu0 0.0
  %302 = vmatmul.mubr.f32.gmra.mxu0 %v89
  %v303 = vpop.f32.mrf.mxu0
  %v304 = vadd.f32 %v56, %v303
  %v305 = vpop.f32.mrf.mxu0
  %v306 = vadd.f32 %v60, %v305
  %307 = vmatprep.mubr.f32.mxu0 0.0
  %308 = vmatmul.mubr.f32.gmra.mxu0 %v92
  %v309 = vpop.f32.mrf.mxu0
  %v310 = vadd.f32 %v56, %v309
  %v311 = vpop.f32.mrf.mxu0
  %v312 = vadd.f32 %v60, %v311
  %313 = vmatprep.mubr.f32.mxu0 0.0
  %314 = vmatmul.mubr.f32.gmra.mxu0 %v95
  %v315 = vpop.f32.mrf.mxu0
  %v316 = vadd.f32 %v56, %v315
  %v317 = vpop.f32.mrf.mxu0
  %v318 = vadd.f32 %v60, %v317
  %319 = vmatprep.mubr.f32.mxu0 0.0
  %320 = vmatmul.mubr.f32.gmra.mxu0 %v98
  %v321 = vpop.f32.mrf.mxu0
  %v322 = vadd.f32 %v56, %v321
  %v323 = vpop.f32.mrf.mxu0
  %v324 = vadd.f32 %v60, %v323
  %325 = vdwg.mxu0
  %326 = vmatprep.subr.mxu0 0.0
  %327 = vmatpush1.msra.mxu0 0.0
  %328 = vmatprep.subr.mxu0 0.0
  %329 = vmatpush1.msra.mxu0 0.0
  %330 = vmatprep.subr.mxu0 0.0
  %331 = vmatpush1.msra.mxu0 0.0
  %332 = vmatprep.subr.mxu0 0.0
  %333 = vmatpush1.msra.mxu0 0.0
  %334 = vmatprep.subr.mxu0 0.0
  %335 = vmatpush1.msra.mxu0 0.0
  %336 = vmatprep.subr.mxu0 0.0
  %337 = vmatpush1.msra.mxu0 0.0
  %338 = vmatprep.subr.mxu0 0.0
  %339 = vmatpush1.msra.mxu0 0.0
  %340 = vmatprep.subr.mxu0 0.0
  %341 = vmatpush1.msra.mxu0 0.0
  %342 = vmatprep.subr.mxu0 0.0
  %343 = vmatpush1.msra.mxu0 0.0
  %344 = vmatprep.subr.mxu0 0.0
  %345 = vmatpush1.msra.mxu0 0.0
  %346 = vmatprep.subr.mxu0 0.0
  %347 = vmatpush1.msra.mxu0 0.0
  %348 = vmatprep.subr.mxu0 0.0
  %349 = vmatpush1.msra.mxu0 0.0
  %350 = vmatprep.subr.mxu0 0.0
  %351 = vmatpush1.msra.mxu0 0.0
  %352 = vmatprep.subr.mxu0 0.0
  %353 = vmatpush1.msra.mxu0 0.0
  %354 = vmatprep.subr.mxu0 %v42
  %355 = vmatpush1.msra.mxu0 %v41
  %356 = vmatprep.subr.mxu0 %v36
  %357 = vmatpush1.msra.mxu0 %v35
  %358 = vmatprep.subr.mxu0 0.0
  %359 = vmatpush2.msra.mxu0 0.0
  %360 = vmatprep.subr.mxu0 0.0
  %361 = vmatpush2.msra.mxu0 0.0
  %362 = vmatprep.subr.mxu0 0.0
  %363 = vmatpush2.msra.mxu0 0.0
  %364 = vmatprep.subr.mxu0 0.0
  %365 = vmatpush2.msra.mxu0 0.0
  %366 = vmatprep.subr.mxu0 0.0
  %367 = vmatpush2.msra.mxu0 0.0
  %368 = vmatprep.subr.mxu0 0.0
  %369 = vmatpush2.msra.mxu0 0.0
  %370 = vmatprep.subr.mxu0 0.0
  %371 = vmatpush2.msra.mxu0 0.0
  %372 = vmatprep.subr.mxu0 0.0
  %373 = vmatpush2.msra.mxu0 0.0
  %374 = vmatprep.subr.mxu0 0.0
  %375 = vmatpush2.msra.mxu0 0.0
  %376 = vmatprep.subr.mxu0 0.0
  %377 = vmatpush2.msra.mxu0 0.0
  %378 = vmatprep.subr.mxu0 0.0
  %379 = vmatpush2.msra.mxu0 0.0
  %380 = vmatprep.subr.mxu0 0.0
  %381 = vmatpush2.msra.mxu0 0.0
  %382 = vmatprep.subr.mxu0 0.0
  %383 = vmatpush2.msra.mxu0 0.0
  %384 = vmatprep.subr.mxu0 0.0
  %385 = vmatpush2.msra.mxu0 0.0
  %386 = vmatprep.subr.mxu0 0.0
  %387 = vmatpush2.msra.mxu0 0.0
  %388 = vmatprep.subr.mxu0 0.0
  %389 = vmatpush2.msra.mxu0 0.0
  %390 = vmatprep.mubr.f32.mxu0 0.0
  %391 = vmatmul.mubr.f32.gmra.mxu0 %v77
  %v392 = vpop.f32.mrf.mxu0
  %v393 = vadd.f32 %v64, %v392
  %v394 = vpop.f32.mrf.mxu0
  %v395 = vadd.f32 %v68, %v394
  %396 = vmatprep.mubr.f32.mxu0 0.0
  %397 = vmatmul.mubr.f32.gmra.mxu0 %v80
  %v398 = vpop.f32.mrf.mxu0
  %v399 = vadd.f32 %v64, %v398
  %v400 = vpop.f32.mrf.mxu0
  %v401 = vadd.f32 %v68, %v400
  %402 = vmatprep.mubr.f32.mxu0 0.0
  %403 = vmatmul.mubr.f32.gmra.mxu0 %v83
  %v404 = vpop.f32.mrf.mxu0
  %v405 = vadd.f32 %v64, %v404
  %v406 = vpop.f32.mrf.mxu0
  %v407 = vadd.f32 %v68, %v406
  %408 = vmatprep.mubr.f32.mxu0 0.0
  %409 = vmatmul.mubr.f32.gmra.mxu0 %v86
  %v410 = vpop.f32.mrf.mxu0
  %v411 = vadd.f32 %v64, %v410
  %v412 = vpop.f32.mrf.mxu0
  %v413 = vadd.f32 %v68, %v412
  %414 = vmatprep.mubr.f32.mxu0 0.0
  %415 = vmatmul.mubr.f32.gmra.mxu0 %v89
  %v416 = vpop.f32.mrf.mxu0
  %v417 = vadd.f32 %v64, %v416
  %v418 = vpop.f32.mrf.mxu0
  %v419 = vadd.f32 %v68, %v418
  %420 = vmatprep.mubr.f32.mxu0 0.0
  %421 = vmatmul.mubr.f32.gmra.mxu0 %v92
  %v422 = vpop.f32.mrf.mxu0
  %v423 = vadd.f32 %v64, %v422
  %v424 = vpop.f32.mrf.mxu0
  %v425 = vadd.f32 %v68, %v424
  %426 = vmatprep.mubr.f32.mxu0 0.0
  %427 = vmatmul.mubr.f32.gmra.mxu0 %v95
  %v428 = vpop.f32.mrf.mxu0
  %v429 = vadd.f32 %v64, %v428
  %v430 = vpop.f32.mrf.mxu0
  %v431 = vadd.f32 %v68, %v430
  %432 = vmatprep.mubr.f32.mxu0 0.0
  %433 = vmatmul.mubr.f32.gmra.mxu0 %v98
  %v434 = vpop.f32.mrf.mxu0
  %v435 = vadd.f32 %v64, %v434
  %v436 = vpop.f32.mrf.mxu0
  %v437 = vadd.f32 %v68, %v436
  %438 = vdwg.mxu0
  %v439 = vmax.f32 %v167, 0.0
  %v440 = vmax.f32 %v169, 0.0
  %v441 = vmax.f32 %v280, 0.0
  %v442 = vmax.f32 %v282, 0.0
  %v443 = vmax.f32 %v393, 0.0
  %v444 = vmax.f32 %v395, 0.0
  %v445 = vmax.f32 %v173, 0.0
  %v446 = vmax.f32 %v175, 0.0
  %v447 = vmax.f32 %v286, 0.0
  %v448 = vmax.f32 %v288, 0.0
  %v449 = vmax.f32 %v399, 0.0
  %v450 = vmax.f32 %v401, 0.0
  %v451 = vmax.f32 %v179, 0.0
  %v452 = vmax.f32 %v181, 0.0
  %v453 = vmax.f32 %v292, 0.0
  %v454 = vmax.f32 %v294, 0.0
  %v455 = vmax.f32 %v405, 0.0
  %v456 = vmax.f32 %v407, 0.0
  %v457 = vmax.f32 %v185, 0.0
  %v458 = vmax.f32 %v187, 0.0
  %v459 = vmax.f32 %v298, 0.0
  %v460 = vmax.f32 %v300, 0.0
  %v461 = vmax.f32 %v411, 0.0
  %v462 = vmax.f32 %v413, 0.0
  %v463 = vmax.f32 %v191, 0.0
  %v464 = vmax.f32 %v193, 0.0
  %v465 = vmax.f32 %v304, 0.0
  %v466 = vmax.f32 %v306, 0.0
  %v467 = vmax.f32 %v417, 0.0
  %v468 = vmax.f32 %v419, 0.0
  %v469 = vmax.f32 %v197, 0.0
  %v470 = vmax.f32 %v199, 0.0
  %v471 = vmax.f32 %v310, 0.0
  %v472 = vmax.f32 %v312, 0.0
  %v473 = vmax.f32 %v423, 0.0
  %v474 = vmax.f32 %v425, 0.0
  %v475 = vmax.f32 %v203, 0.0
  %v476 = vmax.f32 %v205, 0.0
  %v477 = vmax.f32 %v316, 0.0
  %v478 = vmax.f32 %v318, 0.0
  %v479 = vmax.f32 %v429, 0.0
  %v480 = vmax.f32 %v431, 0.0
  %v481 = vmax.f32 %v209, 0.0
  %v482 = vmax.f32 %v211, 0.0
  %v483 = vmax.f32 %v322, 0.0
  %v484 = vmax.f32 %v324, 0.0
  %v485 = vmax.f32 %v435, 0.0
  %v486 = vmax.f32 %v437, 0.0
  %v487 = vld [vmem:[%s3] sm:$0xff]
  %v488 = vld [vmem:[%s3 + $0x8] sm:$0xff]
  %v489 = vld [vmem:[%s3 + $0x10] sm:$0xff]
  %v490 = vld [vmem:[%s3 + $0x18] sm:$0xff]
  %v491 = vld [vmem:[%s3 + $0x20] sm:$0xff]
  %v492 = vld [vmem:[%s3 + $0x28] sm:$0xff]
  %v493 = vld [vmem:[%s3 + $0x30] sm:$0xff]
  %v494 = vld [vmem:[%s3 + $0x38] sm:$0xff]
  %v495 = vld [vmem:[%s3 + $0x40] sm:$0xff]
  %v496 = vld [vmem:[%s3 + $0x48] sm:$0xff]
  %v497 = vld [vmem:[%s3 + $0x50] sm:$0xff]
  %v498 = vld [vmem:[%s3 + $0x58] sm:$0xff]
  %v499 = vld [vmem:[%s3 + $0x60] sm:$0xff]
  %v500 = vld [vmem:[%s3 + $0x68] sm:$0xff]
  %v501 = vld [vmem:[%s3 + $0x70] sm:$0xff]
  %v502 = vld [vmem:[%s3 + $0x78] sm:$0xff]
  %v503 = vld [vmem:[%s3 + $0x80] sm:$0xff]
  %v504 = vld [vmem:[%s3 + $0x88] sm:$0xff]
  %v505 = vld [vmem:[%s3 + $0x90] sm:$0xff]
  %v506 = vld [vmem:[%s3 + $0x98] sm:$0xff]
  %v507 = vld [vmem:[%s3 + $0xa0] sm:$0xff]
  %v508 = vld [vmem:[%s3 + $0xa8] sm:$0xff]
  %v509 = vld [vmem:[%s3 + $0xb0] sm:$0xff]
  %v510 = vld [vmem:[%s3 + $0xb8] sm:$0xff]
  %v511 = vld [vmem:[%s3 + $0xc0] sm:$0xff]
  %v512 = vld [vmem:[%s3 + $0xc8] sm:$0xff]
  %v513 = vld [vmem:[%s3 + $0xd0] sm:$0xff]
  %v514 = vld [vmem:[%s3 + $0xd8] sm:$0xff]
  %v515 = vld [vmem:[%s3 + $0xe0] sm:$0xff]
  %v516 = vld [vmem:[%s3 + $0xe8] sm:$0xff]
  %v517 = vld [vmem:[%s3 + $0xf0] sm:$0xff]
  %v518 = vld [vmem:[%s3 + $0xf8] sm:$0xff]
  %v519 = vld [vmem:[%s3 + $0x100] sm:$0xff]
  %v520 = vld [vmem:[%s3 + $0x108] sm:$0xff]
  %v521 = vld [vmem:[%s3 + $0x110] sm:$0xff]
  %v522 = vld [vmem:[%s3 + $0x118] sm:$0xff]
  %v523 = vld [vmem:[%s3 + $0x120] sm:$0xff]
  %v524 = vld [vmem:[%s3 + $0x128] sm:$0xff]
  %v525 = vld [vmem:[%s3 + $0x130] sm:$0xff]
  %v526 = vld [vmem:[%s3 + $0x138] sm:$0xff]
  %v527 = vld [vmem:[%s3 + $0x140] sm:$0xff]
  %v528 = vld [vmem:[%s3 + $0x148] sm:$0xff]
  %v529 = vld [vmem:[%s3 + $0x150] sm:$0xff]
  %v530 = vld [vmem:[%s3 + $0x158] sm:$0xff]
  %v531 = vld [vmem:[%s3 + $0x160] sm:$0xff]
  %v532 = vld [vmem:[%s3 + $0x168] sm:$0xff]
  %v533 = vld [vmem:[%s3 + $0x170] sm:$0xff]
  %v534 = vld [vmem:[%s3 + $0x178] sm:$0xff]
  %v535 = vld [vmem:[%s3 + $0x180] sm:$0xff]
  %v536 = vld [vmem:[%s3 + $0x188] sm:$0xff]
  %v537 = vld [vmem:[%s3 + $0x190] sm:$0xff]
  %v538 = vld [vmem:[%s3 + $0x198] sm:$0xff]
  %v539 = vld [vmem:[%s3 + $0x1a0] sm:$0xff]
  %v540 = vld [vmem:[%s3 + $0x1a8] sm:$0xff]
  %v541 = vld [vmem:[%s3 + $0x1b0] sm:$0xff]
  %v542 = vld [vmem:[%s3 + $0x1b8] sm:$0xff]
  %v543 = vld [vmem:[%s3 + $0x1c0] sm:$0xff]
  %v544 = vld [vmem:[%s3 + $0x1c8] sm:$0xff]
  %v545 = vld [vmem:[%s3 + $0x1d0] sm:$0xff]
  %v546 = vld [vmem:[%s3 + $0x1d8] sm:$0xff]
  %v547 = vld [vmem:[%s3 + $0x1e0] sm:$0xff]
  %v548 = vld [vmem:[%s3 + $0x1e8] sm:$0xff]
  %v549 = vld [vmem:[%s3 + $0x1f0] sm:$0xff]
  %v550 = vld [vmem:[%s3 + $0x1f8] sm:$0xff]
  %v551 = vld [vmem:[%s3 + $0x200] sm:$0xff]
  %v552 = vld [vmem:[%s3 + $0x208] sm:$0xff]
  %v553 = vld [vmem:[%s3 + $0x210] sm:$0xff]
  %v554 = vld [vmem:[%s3 + $0x218] sm:$0xff]
  %v555 = vld [vmem:[%s3 + $0x220] sm:$0xff]
  %v556 = vld [vmem:[%s3 + $0x228] sm:$0xff]
  %v557 = vld [vmem:[%s3 + $0x230] sm:$0xff]
  %v558 = vld [vmem:[%s3 + $0x238] sm:$0xff]
  %v559 = vld [vmem:[%s3 + $0x240] sm:$0xff]
  %v560 = vld [vmem:[%s3 + $0x248] sm:$0xff]
  %v561 = vld [vmem:[%s3 + $0x250] sm:$0xff]
  %v562 = vld [vmem:[%s3 + $0x258] sm:$0xff]
  %v563 = vld [vmem:[%s3 + $0x260] sm:$0xff]
  %v564 = vld [vmem:[%s3 + $0x268] sm:$0xff]
  %v565 = vld [vmem:[%s3 + $0x270] sm:$0xff]
  %v566 = vld [vmem:[%s3 + $0x278] sm:$0xff]
  %v567 = vld [vmem:[%s3 + $0x280] sm:$0xff]
  %v568 = vld [vmem:[%s3 + $0x288] sm:$0xff]
  %v569 = vld [vmem:[%s3 + $0x290] sm:$0xff]
  %v570 = vld [vmem:[%s3 + $0x298] sm:$0xff]
  %v571 = vld [vmem:[%s3 + $0x2a0] sm:$0xff]
  %v572 = vld [vmem:[%s3 + $0x2a8] sm:$0xff]
  %v573 = vld [vmem:[%s3 + $0x2b0] sm:$0xff]
  %v574 = vld [vmem:[%s3 + $0x2b8] sm:$0xff]
  %v575 = vld [vmem:[%s3 + $0x2c0] sm:$0xff]
  %v576 = vld [vmem:[%s3 + $0x2c8] sm:$0xff]
  %v577 = vld [vmem:[%s3 + $0x2d0] sm:$0xff]
  %v578 = vld [vmem:[%s3 + $0x2d8] sm:$0xff]
  %v579 = vld [vmem:[%s3 + $0x2e0] sm:$0xff]
  %v580 = vld [vmem:[%s3 + $0x2e8] sm:$0xff]
  %v581 = vld [vmem:[%s3 + $0x2f0] sm:$0xff]
  %v582 = vld [vmem:[%s3 + $0x2f8] sm:$0xff]
  %v583 = vld [vmem:[%s4] sm:$0x1]
  %v585 = vlaneseq
  %v586 = vshrl.u32 %v585, 7
  %v587 = vsub.s32 0, %v586
  %v588 = vrot.slane %v583, %v587
  %590 = vmatprep.subr.mxu0 0.0
  %591 = vmatpush1.msra.mxu0 %v502
  %592 = vmatprep.subr.mxu0 0.0
  %593 = vmatpush1.msra.mxu0 %v501
  %594 = vmatprep.subr.mxu0 0.0
  %595 = vmatpush1.msra.mxu0 %v500
  %596 = vmatprep.subr.mxu0 0.0
  %597 = vmatpush1.msra.mxu0 %v499
  %598 = vmatprep.subr.mxu0 0.0
  %599 = vmatpush1.msra.mxu0 %v498
  %600 = vmatprep.subr.mxu0 0.0
  %601 = vmatpush1.msra.mxu0 %v497
  %602 = vmatprep.subr.mxu0 0.0
  %603 = vmatpush1.msra.mxu0 %v496
  %604 = vmatprep.subr.mxu0 0.0
  %605 = vmatpush1.msra.mxu0 %v495
  %606 = vmatprep.subr.mxu0 0.0
  %607 = vmatpush1.msra.mxu0 %v494
  %608 = vmatprep.subr.mxu0 0.0
  %609 = vmatpush1.msra.mxu0 %v493
  %610 = vmatprep.subr.mxu0 0.0
  %611 = vmatpush1.msra.mxu0 %v492
  %612 = vmatprep.subr.mxu0 0.0
  %613 = vmatpush1.msra.mxu0 %v491
  %614 = vmatprep.subr.mxu0 0.0
  %615 = vmatpush1.msra.mxu0 %v490
  %616 = vmatprep.subr.mxu0 0.0
  %617 = vmatpush1.msra.mxu0 %v489
  %618 = vmatprep.subr.mxu0 0.0
  %619 = vmatpush1.msra.mxu0 %v488
  %620 = vmatprep.subr.mxu0 0.0
  %621 = vmatpush1.msra.mxu0 %v487
  %622 = vmatprep.subr.mxu0 0.0
  %623 = vmatpush2.msra.mxu0 %v518
  %624 = vmatprep.subr.mxu0 0.0
  %625 = vmatpush2.msra.mxu0 %v517
  %626 = vmatprep.subr.mxu0 0.0
  %627 = vmatpush2.msra.mxu0 %v516
  %628 = vmatprep.subr.mxu0 0.0
  %629 = vmatpush2.msra.mxu0 %v515
  %630 = vmatprep.subr.mxu0 0.0
  %631 = vmatpush2.msra.mxu0 %v514
  %632 = vmatprep.subr.mxu0 0.0
  %633 = vmatpush2.msra.mxu0 %v513
  %634 = vmatprep.subr.mxu0 0.0
  %635 = vmatpush2.msra.mxu0 %v512
  %636 = vmatprep.subr.mxu0 0.0
  %637 = vmatpush2.msra.mxu0 %v511
  %638 = vmatprep.subr.mxu0 0.0
  %639 = vmatpush2.msra.mxu0 %v510
  %640 = vmatprep.subr.mxu0 0.0
  %641 = vmatpush2.msra.mxu0 %v509
  %642 = vmatprep.subr.mxu0 0.0
  %643 = vmatpush2.msra.mxu0 %v508
  %644 = vmatprep.subr.mxu0 0.0
  %645 = vmatpush2.msra.mxu0 %v507
  %646 = vmatprep.subr.mxu0 0.0
  %647 = vmatpush2.msra.mxu0 %v506
  %648 = vmatprep.subr.mxu0 0.0
  %649 = vmatpush2.msra.mxu0 %v505
  %650 = vmatprep.subr.mxu0 0.0
  %651 = vmatpush2.msra.mxu0 %v504
  %652 = vmatprep.subr.mxu0 0.0
  %653 = vmatpush2.msra.mxu0 %v503
  %654 = vmatprep.mubr.f32.mxu0 %v440
  %655 = vmatmul.mubr.f32.gmra.mxu0 %v439
  %v656 = vpop.f32.mrf.mxu0
  %v657 = vadd.f32 %v588, %v656
  %v658 = vpop.f32.mrf.mxu0
  %659 = vmatprep.mubr.f32.mxu0 %v446
  %660 = vmatmul.mubr.f32.gmra.mxu0 %v445
  %v661 = vpop.f32.mrf.mxu0
  %v662 = vadd.f32 %v588, %v661
  %v663 = vpop.f32.mrf.mxu0
  %664 = vmatprep.mubr.f32.mxu0 %v452
  %665 = vmatmul.mubr.f32.gmra.mxu0 %v451
  %v666 = vpop.f32.mrf.mxu0
  %v667 = vadd.f32 %v588, %v666
  %v668 = vpop.f32.mrf.mxu0
  %669 = vmatprep.mubr.f32.mxu0 %v458
  %670 = vmatmul.mubr.f32.gmra.mxu0 %v457
  %v671 = vpop.f32.mrf.mxu0
  %v672 = vadd.f32 %v588, %v671
  %v673 = vpop.f32.mrf.mxu0
  %674 = vmatprep.mubr.f32.mxu0 %v464
  %675 = vmatmul.mubr.f32.gmra.mxu0 %v463
  %v676 = vpop.f32.mrf.mxu0
  %v677 = vadd.f32 %v588, %v676
  %v678 = vpop.f32.mrf.mxu0
  %679 = vmatprep.mubr.f32.mxu0 %v470
  %680 = vmatmul.mubr.f32.gmra.mxu0 %v469
  %v681 = vpop.f32.mrf.mxu0
  %v682 = vadd.f32 %v588, %v681
  %v683 = vpop.f32.mrf.mxu0
  %684 = vmatprep.mubr.f32.mxu0 %v476
  %685 = vmatmul.mubr.f32.gmra.mxu0 %v475
  %v686 = vpop.f32.mrf.mxu0
  %v687 = vadd.f32 %v588, %v686
  %v688 = vpop.f32.mrf.mxu0
  %689 = vmatprep.mubr.f32.mxu0 %v482
  %690 = vmatmul.mubr.f32.gmra.mxu0 %v481
  %v691 = vpop.f32.mrf.mxu0
  %v692 = vadd.f32 %v588, %v691
  %v693 = vpop.f32.mrf.mxu0
  %694 = vdwg.mxu0
  %695 = vmatprep.subr.mxu0 0.0
  %696 = vmatpush1.msra.mxu0 %v534
  %697 = vmatprep.subr.mxu0 0.0
  %698 = vmatpush1.msra.mxu0 %v533
  %699 = vmatprep.subr.mxu0 0.0
  %700 = vmatpush1.msra.mxu0 %v532
  %701 = vmatprep.subr.mxu0 0.0
  %702 = vmatpush1.msra.mxu0 %v531
  %703 = vmatprep.subr.mxu0 0.0
  %704 = vmatpush1.msra.mxu0 %v530
  %705 = vmatprep.subr.mxu0 0.0
  %706 = vmatpush1.msra.mxu0 %v529
  %707 = vmatprep.subr.mxu0 0.0
  %708 = vmatpush1.msra.mxu0 %v528
  %709 = vmatprep.subr.mxu0 0.0
  %710 = vmatpush1.msra.mxu0 %v527
  %711 = vmatprep.subr.mxu0 0.0
  %712 = vmatpush1.msra.mxu0 %v526
  %713 = vmatprep.subr.mxu0 0.0
  %714 = vmatpush1.msra.mxu0 %v525
  %715 = vmatprep.subr.mxu0 0.0
  %716 = vmatpush1.msra.mxu0 %v524
  %717 = vmatprep.subr.mxu0 0.0
  %718 = vmatpush1.msra.mxu0 %v523
  %719 = vmatprep.subr.mxu0 0.0
  %720 = vmatpush1.msra.mxu0 %v522
  %721 = vmatprep.subr.mxu0 0.0
  %722 = vmatpush1.msra.mxu0 %v521
  %723 = vmatprep.subr.mxu0 0.0
  %724 = vmatpush1.msra.mxu0 %v520
  %725 = vmatprep.subr.mxu0 0.0
  %726 = vmatpush1.msra.mxu0 %v519
  %727 = vmatprep.subr.mxu0 0.0
  %728 = vmatpush2.msra.mxu0 %v550
  %729 = vmatprep.subr.mxu0 0.0
  %730 = vmatpush2.msra.mxu0 %v549
  %731 = vmatprep.subr.mxu0 0.0
  %732 = vmatpush2.msra.mxu0 %v548
  %733 = vmatprep.subr.mxu0 0.0
  %734 = vmatpush2.msra.mxu0 %v547
  %735 = vmatprep.subr.mxu0 0.0
  %736 = vmatpush2.msra.mxu0 %v546
  %737 = vmatprep.subr.mxu0 0.0
  %738 = vmatpush2.msra.mxu0 %v545
  %739 = vmatprep.subr.mxu0 0.0
  %740 = vmatpush2.msra.mxu0 %v544
  %741 = vmatprep.subr.mxu0 0.0
  %742 = vmatpush2.msra.mxu0 %v543
  %743 = vmatprep.subr.mxu0 0.0
  %744 = vmatpush2.msra.mxu0 %v542
  %745 = vmatprep.subr.mxu0 0.0
  %746 = vmatpush2.msra.mxu0 %v541
  %747 = vmatprep.subr.mxu0 0.0
  %748 = vmatpush2.msra.mxu0 %v540
  %749 = vmatprep.subr.mxu0 0.0
  %750 = vmatpush2.msra.mxu0 %v539
  %751 = vmatprep.subr.mxu0 0.0
  %752 = vmatpush2.msra.mxu0 %v538
  %753 = vmatprep.subr.mxu0 0.0
  %754 = vmatpush2.msra.mxu0 %v537
  %755 = vmatprep.subr.mxu0 0.0
  %756 = vmatpush2.msra.mxu0 %v536
  %757 = vmatprep.subr.mxu0 0.0
  %758 = vmatpush2.msra.mxu0 %v535
  %759 = vmatprep.mubr.f32.mxu0 %v442
  %760 = vmatmul.mubr.f32.gmra.mxu0 %v441
  %v761 = vpop.f32.mrf.mxu0
  %v762 = vadd.f32 %v657, %v761
  %v763 = vpop.f32.mrf.mxu0
  %764 = vmatprep.mubr.f32.mxu0 %v448
  %765 = vmatmul.mubr.f32.gmra.mxu0 %v447
  %v766 = vpop.f32.mrf.mxu0
  %v767 = vadd.f32 %v662, %v766
  %v768 = vpop.f32.mrf.mxu0
  %769 = vmatprep.mubr.f32.mxu0 %v454
  %770 = vmatmul.mubr.f32.gmra.mxu0 %v453
  %v771 = vpop.f32.mrf.mxu0
  %v772 = vadd.f32 %v667, %v771
  %v773 = vpop.f32.mrf.mxu0
  %774 = vmatprep.mubr.f32.mxu0 %v460
  %775 = vmatmul.mubr.f32.gmra.mxu0 %v459
  %v776 = vpop.f32.mrf.mxu0
  %v777 = vadd.f32 %v672, %v776
  %v778 = vpop.f32.mrf.mxu0
  %779 = vmatprep.mubr.f32.mxu0 %v466
  %780 = vmatmul.mubr.f32.gmra.mxu0 %v465
  %v781 = vpop.f32.mrf.mxu0
  %v782 = vadd.f32 %v677, %v781
  %v783 = vpop.f32.mrf.mxu0
  %784 = vmatprep.mubr.f32.mxu0 %v472
  %785 = vmatmul.mubr.f32.gmra.mxu0 %v471
  %v786 = vpop.f32.mrf.mxu0
  %v787 = vadd.f32 %v682, %v786
  %v788 = vpop.f32.mrf.mxu0
  %789 = vmatprep.mubr.f32.mxu0 %v478
  %790 = vmatmul.mubr.f32.gmra.mxu0 %v477
  %v791 = vpop.f32.mrf.mxu0
  %v792 = vadd.f32 %v687, %v791
  %v793 = vpop.f32.mrf.mxu0
  %794 = vmatprep.mubr.f32.mxu0 %v484
  %795 = vmatmul.mubr.f32.gmra.mxu0 %v483
  %v796 = vpop.f32.mrf.mxu0
  %v797 = vadd.f32 %v692, %v796
  %v798 = vpop.f32.mrf.mxu0
  %799 = vdwg.mxu0
  %800 = vmatprep.subr.mxu0 0.0
  %801 = vmatpush1.msra.mxu0 %v566
  %802 = vmatprep.subr.mxu0 0.0
  %803 = vmatpush1.msra.mxu0 %v565
  %804 = vmatprep.subr.mxu0 0.0
  %805 = vmatpush1.msra.mxu0 %v564
  %806 = vmatprep.subr.mxu0 0.0
  %807 = vmatpush1.msra.mxu0 %v563
  %808 = vmatprep.subr.mxu0 0.0
  %809 = vmatpush1.msra.mxu0 %v562
  %810 = vmatprep.subr.mxu0 0.0
  %811 = vmatpush1.msra.mxu0 %v561
  %812 = vmatprep.subr.mxu0 0.0
  %813 = vmatpush1.msra.mxu0 %v560
  %814 = vmatprep.subr.mxu0 0.0
  %815 = vmatpush1.msra.mxu0 %v559
  %816 = vmatprep.subr.mxu0 0.0
  %817 = vmatpush1.msra.mxu0 %v558
  %818 = vmatprep.subr.mxu0 0.0
  %819 = vmatpush1.msra.mxu0 %v557
  %820 = vmatprep.subr.mxu0 0.0
  %821 = vmatpush1.msra.mxu0 %v556
  %822 = vmatprep.subr.mxu0 0.0
  %823 = vmatpush1.msra.mxu0 %v555
  %824 = vmatprep.subr.mxu0 0.0
  %825 = vmatpush1.msra.mxu0 %v554
  %826 = vmatprep.subr.mxu0 0.0
  %827 = vmatpush1.msra.mxu0 %v553
  %828 = vmatprep.subr.mxu0 0.0
  %829 = vmatpush1.msra.mxu0 %v552
  %830 = vmatprep.subr.mxu0 0.0
  %831 = vmatpush1.msra.mxu0 %v551
  %832 = vmatprep.subr.mxu0 0.0
  %833 = vmatpush2.msra.mxu0 %v582
  %834 = vmatprep.subr.mxu0 0.0
  %835 = vmatpush2.msra.mxu0 %v581
  %836 = vmatprep.subr.mxu0 0.0
  %837 = vmatpush2.msra.mxu0 %v580
  %838 = vmatprep.subr.mxu0 0.0
  %839 = vmatpush2.msra.mxu0 %v579
  %840 = vmatprep.subr.mxu0 0.0
  %841 = vmatpush2.msra.mxu0 %v578
  %842 = vmatprep.subr.mxu0 0.0
  %843 = vmatpush2.msra.mxu0 %v577
  %844 = vmatprep.subr.mxu0 0.0
  %845 = vmatpush2.msra.mxu0 %v576
  %846 = vmatprep.subr.mxu0 0.0
  %847 = vmatpush2.msra.mxu0 %v575
  %848 = vmatprep.subr.mxu0 0.0
  %849 = vmatpush2.msra.mxu0 %v574
  %850 = vmatprep.subr.mxu0 0.0
  %851 = vmatpush2.msra.mxu0 %v573
  %852 = vmatprep.subr.mxu0 0.0
  %853 = vmatpush2.msra.mxu0 %v572
  %854 = vmatprep.subr.mxu0 0.0
  %855 = vmatpush2.msra.mxu0 %v571
  %856 = vmatprep.subr.mxu0 0.0
  %857 = vmatpush2.msra.mxu0 %v570
  %858 = vmatprep.subr.mxu0 0.0
  %859 = vmatpush2.msra.mxu0 %v569
  %860 = vmatprep.subr.mxu0 0.0
  %861 = vmatpush2.msra.mxu0 %v568
  %862 = vmatprep.subr.mxu0 0.0
  %863 = vmatpush2.msra.mxu0 %v567
  %864 = vmatprep.mubr.f32.mxu0 %v444
  %865 = vmatmul.mubr.f32.gmra.mxu0 %v443
  %v866 = vpop.f32.mrf.mxu0
  %v867 = vadd.f32 %v762, %v866
  %v868 = vpop.f32.mrf.mxu0
  %869 = vmatprep.mubr.f32.mxu0 %v450
  %870 = vmatmul.mubr.f32.gmra.mxu0 %v449
  %v871 = vpop.f32.mrf.mxu0
  %v872 = vadd.f32 %v767, %v871
  %v873 = vpop.f32.mrf.mxu0
  %874 = vmatprep.mubr.f32.mxu0 %v456
  %875 = vmatmul.mubr.f32.gmra.mxu0 %v455
  %v876 = vpop.f32.mrf.mxu0
  %v877 = vadd.f32 %v772, %v876
  %v878 = vpop.f32.mrf.mxu0
  %879 = vmatprep.mubr.f32.mxu0 %v462
  %880 = vmatmul.mubr.f32.gmra.mxu0 %v461
  %v881 = vpop.f32.mrf.mxu0
  %v882 = vadd.f32 %v777, %v881
  %v883 = vpop.f32.mrf.mxu0
  %884 = vmatprep.mubr.f32.mxu0 %v468
  %885 = vmatmul.mubr.f32.gmra.mxu0 %v467
  %v886 = vpop.f32.mrf.mxu0
  %v887 = vadd.f32 %v782, %v886
  %v888 = vpop.f32.mrf.mxu0
  %889 = vmatprep.mubr.f32.mxu0 %v474
  %890 = vmatmul.mubr.f32.gmra.mxu0 %v473
  %v891 = vpop.f32.mrf.mxu0
  %v892 = vadd.f32 %v787, %v891
  %v893 = vpop.f32.mrf.mxu0
  %894 = vmatprep.mubr.f32.mxu0 %v480
  %895 = vmatmul.mubr.f32.gmra.mxu0 %v479
  %v896 = vpop.f32.mrf.mxu0
  %v897 = vadd.f32 %v792, %v896
  %v898 = vpop.f32.mrf.mxu0
  %899 = vmatprep.mubr.f32.mxu0 %v486
  %900 = vmatmul.mubr.f32.gmra.mxu0 %v485
  %v901 = vpop.f32.mrf.mxu0
  %v902 = vadd.f32 %v797, %v901
  %v903 = vpop.f32.mrf.mxu0
  %904 = vdwg.mxu0
  %vm905 = vcmp.lt.f32.partialorder %v867, 0.0
  %vm906 = vcmp.lt.f32.partialorder %v872, 0.0
  %vm907 = vcmp.lt.f32.partialorder %v877, 0.0
  %vm908 = vcmp.lt.f32.partialorder %v882, 0.0
  %vm909 = vcmp.lt.f32.partialorder %v887, 0.0
  %vm910 = vcmp.lt.f32.partialorder %v892, 0.0
  %vm911 = vcmp.lt.f32.partialorder %v897, 0.0
  %vm912 = vcmp.lt.f32.partialorder %v902, 0.0
  %v913 = vsel %vm905, 1, 0
  %v914 = vsel %vm906, 1, 0
  %v915 = vsel %vm907, 1, 0
  %v916 = vsel %vm908, 1, 0
  %v917 = vsel %vm909, 1, 0
  %v918 = vsel %vm910, 1, 0
  %v919 = vsel %vm911, 1, 0
  %v920 = vsel %vm912, 1, 0
  %vm921 = vcmp.eq.s32.totalorder %v913, 1
  %vm922 = vcmp.eq.s32.totalorder %v914, 1
  %vm923 = vcmp.eq.s32.totalorder %v915, 1
  %vm924 = vcmp.eq.s32.totalorder %v916, 1
  %vm925 = vcmp.eq.s32.totalorder %v917, 1
  %vm926 = vcmp.eq.s32.totalorder %v918, 1
  %vm927 = vcmp.eq.s32.totalorder %v919, 1
  %vm928 = vcmp.eq.s32.totalorder %v920, 1
  %937 = vrot.lane.b32.xlu0 %v867, 112
  %v938 = vpop.permute.xlu0 %937
  %939 = vrot.lane.b32.xlu0 %v872, 112
  %v940 = vpop.permute.xlu0 %939
  %941 = vrot.lane.b32.xlu0 %v877, 112
  %v942 = vpop.permute.xlu0 %941
  %943 = vrot.lane.b32.xlu0 %v882, 112
  %v944 = vpop.permute.xlu0 %943
  %945 = vrot.lane.b32.xlu0 %v887, 112
  %v946 = vpop.permute.xlu0 %945
  %947 = vrot.lane.b32.xlu0 %v892, 112
  %v948 = vpop.permute.xlu0 %947
  %949 = vrot.lane.b32.xlu0 %v897, 112
  %v950 = vpop.permute.xlu0 %949
  %951 = vrot.lane.b32.xlu0 %v902, 112
  %v952 = vpop.permute.xlu0 %951
  %961 = vrot.lane.b32.xlu0 %v867, 120
  %v962 = vpop.permute.xlu0 %961
  %963 = vrot.lane.b32.xlu0 %v872, 120
  %v964 = vpop.permute.xlu0 %963
  %965 = vrot.lane.b32.xlu0 %v877, 120
  %v966 = vpop.permute.xlu0 %965
  %967 = vrot.lane.b32.xlu0 %v882, 120
  %v968 = vpop.permute.xlu0 %967
  %969 = vrot.lane.b32.xlu0 %v887, 120
  %v970 = vpop.permute.xlu0 %969
  %971 = vrot.lane.b32.xlu0 %v892, 120
  %v972 = vpop.permute.xlu0 %971
  %973 = vrot.lane.b32.xlu0 %v897, 120
  %v974 = vpop.permute.xlu0 %973
  %975 = vrot.lane.b32.xlu0 %v902, 120
  %v976 = vpop.permute.xlu0 %975
  %v985 = vsel %vm921, %v938, %v962
  %v986 = vsel %vm922, %v940, %v964
  %v987 = vsel %vm923, %v942, %v966
  %v988 = vsel %vm924, %v944, %v968
  %v989 = vsel %vm925, %v946, %v970
  %v990 = vsel %vm926, %v948, %v972
  %v991 = vsel %vm927, %v950, %v974
  %v992 = vsel %vm928, %v952, %v976
  %vm993 = vcmp.lt.f32.partialorder %v985, 0.0
  %vm994 = vcmp.lt.f32.partialorder %v986, 0.0
  %vm995 = vcmp.lt.f32.partialorder %v987, 0.0
  %vm996 = vcmp.lt.f32.partialorder %v988, 0.0
  %vm997 = vcmp.lt.f32.partialorder %v989, 0.0
  %vm998 = vcmp.lt.f32.partialorder %v990, 0.0
  %vm999 = vcmp.lt.f32.partialorder %v991, 0.0
  %vm1000 = vcmp.lt.f32.partialorder %v992, 0.0
  %v1001 = vsel %vm993, 1, 0
  %v1002 = vsel %vm994, 1, 0
  %v1003 = vsel %vm995, 1, 0
  %v1004 = vsel %vm996, 1, 0
  %v1005 = vsel %vm997, 1, 0
  %v1006 = vsel %vm998, 1, 0
  %v1007 = vsel %vm999, 1, 0
  %v1008 = vsel %vm1000, 1, 0
  %v1009 = vmul.u32 %v913, 2
  %v1010 = vmul.u32 %v914, 2
  %v1011 = vmul.u32 %v915, 2
  %v1012 = vmul.u32 %v916, 2
  %v1013 = vmul.u32 %v917, 2
  %v1014 = vmul.u32 %v918, 2
  %v1015 = vmul.u32 %v919, 2
  %v1016 = vmul.u32 %v920, 2
  %v1017 = vadd.s32 %v1009, %v1001
  %v1018 = vadd.s32 %v1010, %v1002
  %v1019 = vadd.s32 %v1011, %v1003
  %v1020 = vadd.s32 %v1012, %v1004
  %v1021 = vadd.s32 %v1013, %v1005
  %v1022 = vadd.s32 %v1014, %v1006
  %v1023 = vadd.s32 %v1015, %v1007
  %v1024 = vadd.s32 %v1016, %v1008
  %v1025 = vld [vmem:[%s5] sm:$0xf]
  %vm1026 = vcmp.eq.s32.totalorder %v1017, 0
  %vm1027 = vcmp.eq.s32.totalorder %v1018, 0
  %vm1028 = vcmp.eq.s32.totalorder %v1019, 0
  %vm1029 = vcmp.eq.s32.totalorder %v1020, 0
  %vm1030 = vcmp.eq.s32.totalorder %v1021, 0
  %vm1031 = vcmp.eq.s32.totalorder %v1022, 0
  %vm1032 = vcmp.eq.s32.totalorder %v1023, 0
  %vm1033 = vcmp.eq.s32.totalorder %v1024, 0
  %v1034 = vlaneseq
  %v1035 = vshrl.u32 %v1034, 7
  %v1036 = vsub.s32 0, %v1035
  %v1037 = vrot.slane %v1025, %v1036
  %v1038 = vsel %vm1026, %v1037, 0
  %v1039 = vsel %vm1027, %v1037, 0
  %v1040 = vsel %vm1028, %v1037, 0
  %v1041 = vsel %vm1029, %v1037, 0
  %v1042 = vsel %vm1030, %v1037, 0
  %v1043 = vsel %vm1031, %v1037, 0
  %v1044 = vsel %vm1032, %v1037, 0
  %v1045 = vsel %vm1033, %v1037, 0
  %vm1046 = vcmp.eq.s32.totalorder %v1017, 1
  %vm1047 = vcmp.eq.s32.totalorder %v1018, 1
  %vm1048 = vcmp.eq.s32.totalorder %v1019, 1
  %vm1049 = vcmp.eq.s32.totalorder %v1020, 1
  %vm1050 = vcmp.eq.s32.totalorder %v1021, 1
  %vm1051 = vcmp.eq.s32.totalorder %v1022, 1
  %vm1052 = vcmp.eq.s32.totalorder %v1023, 1
  %vm1053 = vcmp.eq.s32.totalorder %v1024, 1
  %v1054 = vlaneseq
  %v1055 = vshrl.u32 %v1054, 7
  %v1056 = vsub.s32 1, %v1055
  %v1057 = vrot.slane %v1025, %v1056
  %v1058 = vsel %vm1046, %v1057, %v1038
  %v1059 = vsel %vm1047, %v1057, %v1039
  %v1060 = vsel %vm1048, %v1057, %v1040
  %v1061 = vsel %vm1049, %v1057, %v1041
  %v1062 = vsel %vm1050, %v1057, %v1042
  %v1063 = vsel %vm1051, %v1057, %v1043
  %v1064 = vsel %vm1052, %v1057, %v1044
  %v1065 = vsel %vm1053, %v1057, %v1045
  %vm1066 = vcmp.eq.s32.totalorder %v1017, 2
  %vm1067 = vcmp.eq.s32.totalorder %v1018, 2
  %vm1068 = vcmp.eq.s32.totalorder %v1019, 2
  %vm1069 = vcmp.eq.s32.totalorder %v1020, 2
  %vm1070 = vcmp.eq.s32.totalorder %v1021, 2
  %vm1071 = vcmp.eq.s32.totalorder %v1022, 2
  %vm1072 = vcmp.eq.s32.totalorder %v1023, 2
  %vm1073 = vcmp.eq.s32.totalorder %v1024, 2
  %v1074 = vlaneseq
  %v1075 = vshrl.u32 %v1074, 7
  %v1076 = vsub.s32 2, %v1075
  %v1077 = vrot.slane %v1025, %v1076
  %v1078 = vsel %vm1066, %v1077, %v1058
  %v1079 = vsel %vm1067, %v1077, %v1059
  %v1080 = vsel %vm1068, %v1077, %v1060
  %v1081 = vsel %vm1069, %v1077, %v1061
  %v1082 = vsel %vm1070, %v1077, %v1062
  %v1083 = vsel %vm1071, %v1077, %v1063
  %v1084 = vsel %vm1072, %v1077, %v1064
  %v1085 = vsel %vm1073, %v1077, %v1065
  %vm1086 = vcmp.eq.s32.totalorder %v1017, 3
  %vm1087 = vcmp.eq.s32.totalorder %v1018, 3
  %vm1088 = vcmp.eq.s32.totalorder %v1019, 3
  %vm1089 = vcmp.eq.s32.totalorder %v1020, 3
  %vm1090 = vcmp.eq.s32.totalorder %v1021, 3
  %vm1091 = vcmp.eq.s32.totalorder %v1022, 3
  %vm1092 = vcmp.eq.s32.totalorder %v1023, 3
  %vm1093 = vcmp.eq.s32.totalorder %v1024, 3
  %v1094 = vlaneseq
  %v1095 = vshrl.u32 %v1094, 7
  %v1096 = vsub.s32 3, %v1095
  %v1097 = vrot.slane %v1025, %v1096
  %v1098 = vsel %vm1086, %v1097, %v1078
  %v1099 = vsel %vm1087, %v1097, %v1079
  %v1100 = vsel %vm1088, %v1097, %v1080
  %v1101 = vsel %vm1089, %v1097, %v1081
  %v1102 = vsel %vm1090, %v1097, %v1082
  %v1103 = vsel %vm1091, %v1097, %v1083
  %v1104 = vsel %vm1092, %v1097, %v1084
  %v1105 = vsel %vm1093, %v1097, %v1085
  %v1106 = vlaneseq
  %v1107 = vand.u32 %v1106, 127
  %1108 = vset.pattern.permute.xlu0 0
  %1109 = vperm.xlu0 %1108, %v1098
  %v1110 = vpop.permute.xlu0 %1109
  %1111 = vset.pattern.permute.xlu0 0
  %1112 = vperm.xlu0 %1111, %v1099
  %v1113 = vpop.permute.xlu0 %1112
  %1114 = vset.pattern.permute.xlu0 0
  %1115 = vperm.xlu0 %1114, %v1100
  %v1116 = vpop.permute.xlu0 %1115
  %1117 = vset.pattern.permute.xlu0 0
  %1118 = vperm.xlu0 %1117, %v1101
  %v1119 = vpop.permute.xlu0 %1118
  %1120 = vset.pattern.permute.xlu0 0
  %1121 = vperm.xlu0 %1120, %v1102
  %v1122 = vpop.permute.xlu0 %1121
  %1123 = vset.pattern.permute.xlu0 0
  %1124 = vperm.xlu0 %1123, %v1103
  %v1125 = vpop.permute.xlu0 %1124
  %1126 = vset.pattern.permute.xlu0 0
  %1127 = vperm.xlu0 %1126, %v1104
  %v1128 = vpop.permute.xlu0 %1127
  %1129 = vset.pattern.permute.xlu0 0
  %1130 = vperm.xlu0 %1129, %v1105
  %v1131 = vpop.permute.xlu0 %1130
  %vm1132 = vcmp.eq.s32.totalorder %v1107, %v1110
  %vm1133 = vcmp.eq.s32.totalorder %v1107, %v1113
  %vm1134 = vcmp.eq.s32.totalorder %v1107, %v1116
  %vm1135 = vcmp.eq.s32.totalorder %v1107, %v1119
  %vm1136 = vcmp.eq.s32.totalorder %v1107, %v1122
  %vm1137 = vcmp.eq.s32.totalorder %v1107, %v1125
  %vm1138 = vcmp.eq.s32.totalorder %v1107, %v1128
  %vm1139 = vcmp.eq.s32.totalorder %v1107, %v1131
  %v1140 = vsel %vm1132, 1, 0
  %v1141 = vsel %vm1133, 1, 0
  %v1142 = vsel %vm1134, 1, 0
  %v1143 = vsel %vm1135, 1, 0
  %v1144 = vsel %vm1136, 1, 0
  %v1145 = vsel %vm1137, 1, 0
  %v1146 = vsel %vm1138, 1, 0
  %v1147 = vsel %vm1139, 1, 0
  %1148 = vset.pattern.permute.xlu0 1
  %1149 = vperm.xlu0 %1148, %v1098
  %v1150 = vpop.permute.xlu0 %1149
  %1151 = vset.pattern.permute.xlu0 1
  %1152 = vperm.xlu0 %1151, %v1099
  %v1153 = vpop.permute.xlu0 %1152
  %1154 = vset.pattern.permute.xlu0 1
  %1155 = vperm.xlu0 %1154, %v1100
  %v1156 = vpop.permute.xlu0 %1155
  %1157 = vset.pattern.permute.xlu0 1
  %1158 = vperm.xlu0 %1157, %v1101
  %v1159 = vpop.permute.xlu0 %1158
  %1160 = vset.pattern.permute.xlu0 1
  %1161 = vperm.xlu0 %1160, %v1102
  %v1162 = vpop.permute.xlu0 %1161
  %1163 = vset.pattern.permute.xlu0 1
  %1164 = vperm.xlu0 %1163, %v1103
  %v1165 = vpop.permute.xlu0 %1164
  %1166 = vset.pattern.permute.xlu0 1
  %1167 = vperm.xlu0 %1166, %v1104
  %v1168 = vpop.permute.xlu0 %1167
  %1169 = vset.pattern.permute.xlu0 1
  %1170 = vperm.xlu0 %1169, %v1105
  %v1171 = vpop.permute.xlu0 %1170
  %vm1172 = vcmp.eq.s32.totalorder %v1107, %v1150
  %vm1173 = vcmp.eq.s32.totalorder %v1107, %v1153
  %vm1174 = vcmp.eq.s32.totalorder %v1107, %v1156
  %vm1175 = vcmp.eq.s32.totalorder %v1107, %v1159
  %vm1176 = vcmp.eq.s32.totalorder %v1107, %v1162
  %vm1177 = vcmp.eq.s32.totalorder %v1107, %v1165
  %vm1178 = vcmp.eq.s32.totalorder %v1107, %v1168
  %vm1179 = vcmp.eq.s32.totalorder %v1107, %v1171
  %v1180 = vsel %vm1172, 1, 0
  %v1181 = vsel %vm1173, 1, 0
  %v1182 = vsel %vm1174, 1, 0
  %v1183 = vsel %vm1175, 1, 0
  %v1184 = vsel %vm1176, 1, 0
  %v1185 = vsel %vm1177, 1, 0
  %v1186 = vsel %vm1178, 1, 0
  %v1187 = vsel %vm1179, 1, 0
  %v1188 = vadd.s32 %v1140, %v1180
  %v1189 = vadd.s32 %v1141, %v1181
  %v1190 = vadd.s32 %v1142, %v1182
  %v1191 = vadd.s32 %v1143, %v1183
  %v1192 = vadd.s32 %v1144, %v1184
  %v1193 = vadd.s32 %v1145, %v1185
  %v1194 = vadd.s32 %v1146, %v1186
  %v1195 = vadd.s32 %v1147, %v1187
  %1196 = vset.pattern.permute.xlu0 2
  %1197 = vperm.xlu0 %1196, %v1098
  %v1198 = vpop.permute.xlu0 %1197
  %1199 = vset.pattern.permute.xlu0 2
  %1200 = vperm.xlu0 %1199, %v1099
  %v1201 = vpop.permute.xlu0 %1200
  %1202 = vset.pattern.permute.xlu0 2
  %1203 = vperm.xlu0 %1202, %v1100
  %v1204 = vpop.permute.xlu0 %1203
  %1205 = vset.pattern.permute.xlu0 2
  %1206 = vperm.xlu0 %1205, %v1101
  %v1207 = vpop.permute.xlu0 %1206
  %1208 = vset.pattern.permute.xlu0 2
  %1209 = vperm.xlu0 %1208, %v1102
  %v1210 = vpop.permute.xlu0 %1209
  %1211 = vset.pattern.permute.xlu0 2
  %1212 = vperm.xlu0 %1211, %v1103
  %v1213 = vpop.permute.xlu0 %1212
  %1214 = vset.pattern.permute.xlu0 2
  %1215 = vperm.xlu0 %1214, %v1104
  %v1216 = vpop.permute.xlu0 %1215
  %1217 = vset.pattern.permute.xlu0 2
  %1218 = vperm.xlu0 %1217, %v1105
  %v1219 = vpop.permute.xlu0 %1218
  %vm1220 = vcmp.eq.s32.totalorder %v1107, %v1198
  %vm1221 = vcmp.eq.s32.totalorder %v1107, %v1201
  %vm1222 = vcmp.eq.s32.totalorder %v1107, %v1204
  %vm1223 = vcmp.eq.s32.totalorder %v1107, %v1207
  %vm1224 = vcmp.eq.s32.totalorder %v1107, %v1210
  %vm1225 = vcmp.eq.s32.totalorder %v1107, %v1213
  %vm1226 = vcmp.eq.s32.totalorder %v1107, %v1216
  %vm1227 = vcmp.eq.s32.totalorder %v1107, %v1219
  %v1228 = vsel %vm1220, 1, 0
  %v1229 = vsel %vm1221, 1, 0
  %v1230 = vsel %vm1222, 1, 0
  %v1231 = vsel %vm1223, 1, 0
  %v1232 = vsel %vm1224, 1, 0
  %v1233 = vsel %vm1225, 1, 0
  %v1234 = vsel %vm1226, 1, 0
  %v1235 = vsel %vm1227, 1, 0
  %v1236 = vadd.s32 %v1188, %v1228
  %v1237 = vadd.s32 %v1189, %v1229
  %v1238 = vadd.s32 %v1190, %v1230
  %v1239 = vadd.s32 %v1191, %v1231
  %v1240 = vadd.s32 %v1192, %v1232
  %v1241 = vadd.s32 %v1193, %v1233
  %v1242 = vadd.s32 %v1194, %v1234
  %v1243 = vadd.s32 %v1195, %v1235
  %1244 = vset.pattern.permute.xlu0 3
  %1245 = vperm.xlu0 %1244, %v1098
  %v1246 = vpop.permute.xlu0 %1245
  %1247 = vset.pattern.permute.xlu0 3
  %1248 = vperm.xlu0 %1247, %v1099
  %v1249 = vpop.permute.xlu0 %1248
  %1250 = vset.pattern.permute.xlu0 3
  %1251 = vperm.xlu0 %1250, %v1100
  %v1252 = vpop.permute.xlu0 %1251
  %1253 = vset.pattern.permute.xlu0 3
  %1254 = vperm.xlu0 %1253, %v1101
  %v1255 = vpop.permute.xlu0 %1254
  %1256 = vset.pattern.permute.xlu0 3
  %1257 = vperm.xlu0 %1256, %v1102
  %v1258 = vpop.permute.xlu0 %1257
  %1259 = vset.pattern.permute.xlu0 3
  %1260 = vperm.xlu0 %1259, %v1103
  %v1261 = vpop.permute.xlu0 %1260
  %1262 = vset.pattern.permute.xlu0 3
  %1263 = vperm.xlu0 %1262, %v1104
  %v1264 = vpop.permute.xlu0 %1263
  %1265 = vset.pattern.permute.xlu0 3
  %1266 = vperm.xlu0 %1265, %v1105
  %v1267 = vpop.permute.xlu0 %1266
  %vm1268 = vcmp.eq.s32.totalorder %v1107, %v1246
  %vm1269 = vcmp.eq.s32.totalorder %v1107, %v1249
  %vm1270 = vcmp.eq.s32.totalorder %v1107, %v1252
  %vm1271 = vcmp.eq.s32.totalorder %v1107, %v1255
  %vm1272 = vcmp.eq.s32.totalorder %v1107, %v1258
  %vm1273 = vcmp.eq.s32.totalorder %v1107, %v1261
  %vm1274 = vcmp.eq.s32.totalorder %v1107, %v1264
  %vm1275 = vcmp.eq.s32.totalorder %v1107, %v1267
  %v1276 = vsel %vm1268, 1, 0
  %v1277 = vsel %vm1269, 1, 0
  %v1278 = vsel %vm1270, 1, 0
  %v1279 = vsel %vm1271, 1, 0
  %v1280 = vsel %vm1272, 1, 0
  %v1281 = vsel %vm1273, 1, 0
  %v1282 = vsel %vm1274, 1, 0
  %v1283 = vsel %vm1275, 1, 0
  %v1284 = vadd.s32 %v1236, %v1276
  %v1285 = vadd.s32 %v1237, %v1277
  %v1286 = vadd.s32 %v1238, %v1278
  %v1287 = vadd.s32 %v1239, %v1279
  %v1288 = vadd.s32 %v1240, %v1280
  %v1289 = vadd.s32 %v1241, %v1281
  %v1290 = vadd.s32 %v1242, %v1282
  %v1291 = vadd.s32 %v1243, %v1283
  %1292 = vset.pattern.permute.xlu0 4
  %1293 = vperm.xlu0 %1292, %v1098
  %v1294 = vpop.permute.xlu0 %1293
  %1295 = vset.pattern.permute.xlu0 4
  %1296 = vperm.xlu0 %1295, %v1099
  %v1297 = vpop.permute.xlu0 %1296
  %1298 = vset.pattern.permute.xlu0 4
  %1299 = vperm.xlu0 %1298, %v1100
  %v1300 = vpop.permute.xlu0 %1299
  %1301 = vset.pattern.permute.xlu0 4
  %1302 = vperm.xlu0 %1301, %v1101
  %v1303 = vpop.permute.xlu0 %1302
  %1304 = vset.pattern.permute.xlu0 4
  %1305 = vperm.xlu0 %1304, %v1102
  %v1306 = vpop.permute.xlu0 %1305
  %1307 = vset.pattern.permute.xlu0 4
  %1308 = vperm.xlu0 %1307, %v1103
  %v1309 = vpop.permute.xlu0 %1308
  %1310 = vset.pattern.permute.xlu0 4
  %1311 = vperm.xlu0 %1310, %v1104
  %v1312 = vpop.permute.xlu0 %1311
  %1313 = vset.pattern.permute.xlu0 4
  %1314 = vperm.xlu0 %1313, %v1105
  %v1315 = vpop.permute.xlu0 %1314
  %vm1316 = vcmp.eq.s32.totalorder %v1107, %v1294
  %vm1317 = vcmp.eq.s32.totalorder %v1107, %v1297
  %vm1318 = vcmp.eq.s32.totalorder %v1107, %v1300
  %vm1319 = vcmp.eq.s32.totalorder %v1107, %v1303
  %vm1320 = vcmp.eq.s32.totalorder %v1107, %v1306
  %vm1321 = vcmp.eq.s32.totalorder %v1107, %v1309
  %vm1322 = vcmp.eq.s32.totalorder %v1107, %v1312
  %vm1323 = vcmp.eq.s32.totalorder %v1107, %v1315
  %v1324 = vsel %vm1316, 1, 0
  %v1325 = vsel %vm1317, 1, 0
  %v1326 = vsel %vm1318, 1, 0
  %v1327 = vsel %vm1319, 1, 0
  %v1328 = vsel %vm1320, 1, 0
  %v1329 = vsel %vm1321, 1, 0
  %v1330 = vsel %vm1322, 1, 0
  %v1331 = vsel %vm1323, 1, 0
  %v1332 = vadd.s32 %v1284, %v1324
  %v1333 = vadd.s32 %v1285, %v1325
  %v1334 = vadd.s32 %v1286, %v1326
  %v1335 = vadd.s32 %v1287, %v1327
  %v1336 = vadd.s32 %v1288, %v1328
  %v1337 = vadd.s32 %v1289, %v1329
  %v1338 = vadd.s32 %v1290, %v1330
  %v1339 = vadd.s32 %v1291, %v1331
  %1340 = vset.pattern.permute.xlu0 5
  %1341 = vperm.xlu0 %1340, %v1098
  %v1342 = vpop.permute.xlu0 %1341
  %1343 = vset.pattern.permute.xlu0 5
  %1344 = vperm.xlu0 %1343, %v1099
  %v1345 = vpop.permute.xlu0 %1344
  %1346 = vset.pattern.permute.xlu0 5
  %1347 = vperm.xlu0 %1346, %v1100
  %v1348 = vpop.permute.xlu0 %1347
  %1349 = vset.pattern.permute.xlu0 5
  %1350 = vperm.xlu0 %1349, %v1101
  %v1351 = vpop.permute.xlu0 %1350
  %1352 = vset.pattern.permute.xlu0 5
  %1353 = vperm.xlu0 %1352, %v1102
  %v1354 = vpop.permute.xlu0 %1353
  %1355 = vset.pattern.permute.xlu0 5
  %1356 = vperm.xlu0 %1355, %v1103
  %v1357 = vpop.permute.xlu0 %1356
  %1358 = vset.pattern.permute.xlu0 5
  %1359 = vperm.xlu0 %1358, %v1104
  %v1360 = vpop.permute.xlu0 %1359
  %1361 = vset.pattern.permute.xlu0 5
  %1362 = vperm.xlu0 %1361, %v1105
  %v1363 = vpop.permute.xlu0 %1362
  %vm1364 = vcmp.eq.s32.totalorder %v1107, %v1342
  %vm1365 = vcmp.eq.s32.totalorder %v1107, %v1345
  %vm1366 = vcmp.eq.s32.totalorder %v1107, %v1348
  %vm1367 = vcmp.eq.s32.totalorder %v1107, %v1351
  %vm1368 = vcmp.eq.s32.totalorder %v1107, %v1354
  %vm1369 = vcmp.eq.s32.totalorder %v1107, %v1357
  %vm1370 = vcmp.eq.s32.totalorder %v1107, %v1360
  %vm1371 = vcmp.eq.s32.totalorder %v1107, %v1363
  %v1372 = vsel %vm1364, 1, 0
  %v1373 = vsel %vm1365, 1, 0
  %v1374 = vsel %vm1366, 1, 0
  %v1375 = vsel %vm1367, 1, 0
  %v1376 = vsel %vm1368, 1, 0
  %v1377 = vsel %vm1369, 1, 0
  %v1378 = vsel %vm1370, 1, 0
  %v1379 = vsel %vm1371, 1, 0
  %v1380 = vadd.s32 %v1332, %v1372
  %v1381 = vadd.s32 %v1333, %v1373
  %v1382 = vadd.s32 %v1334, %v1374
  %v1383 = vadd.s32 %v1335, %v1375
  %v1384 = vadd.s32 %v1336, %v1376
  %v1385 = vadd.s32 %v1337, %v1377
  %v1386 = vadd.s32 %v1338, %v1378
  %v1387 = vadd.s32 %v1339, %v1379
  %1388 = vset.pattern.permute.xlu0 6
  %1389 = vperm.xlu0 %1388, %v1098
  %v1390 = vpop.permute.xlu0 %1389
  %1391 = vset.pattern.permute.xlu0 6
  %1392 = vperm.xlu0 %1391, %v1099
  %v1393 = vpop.permute.xlu0 %1392
  %1394 = vset.pattern.permute.xlu0 6
  %1395 = vperm.xlu0 %1394, %v1100
  %v1396 = vpop.permute.xlu0 %1395
  %1397 = vset.pattern.permute.xlu0 6
  %1398 = vperm.xlu0 %1397, %v1101
  %v1399 = vpop.permute.xlu0 %1398
  %1400 = vset.pattern.permute.xlu0 6
  %1401 = vperm.xlu0 %1400, %v1102
  %v1402 = vpop.permute.xlu0 %1401
  %1403 = vset.pattern.permute.xlu0 6
  %1404 = vperm.xlu0 %1403, %v1103
  %v1405 = vpop.permute.xlu0 %1404
  %1406 = vset.pattern.permute.xlu0 6
  %1407 = vperm.xlu0 %1406, %v1104
  %v1408 = vpop.permute.xlu0 %1407
  %1409 = vset.pattern.permute.xlu0 6
  %1410 = vperm.xlu0 %1409, %v1105
  %v1411 = vpop.permute.xlu0 %1410
  %vm1412 = vcmp.eq.s32.totalorder %v1107, %v1390
  %vm1413 = vcmp.eq.s32.totalorder %v1107, %v1393
  %vm1414 = vcmp.eq.s32.totalorder %v1107, %v1396
  %vm1415 = vcmp.eq.s32.totalorder %v1107, %v1399
  %vm1416 = vcmp.eq.s32.totalorder %v1107, %v1402
  %vm1417 = vcmp.eq.s32.totalorder %v1107, %v1405
  %vm1418 = vcmp.eq.s32.totalorder %v1107, %v1408
  %vm1419 = vcmp.eq.s32.totalorder %v1107, %v1411
  %v1420 = vsel %vm1412, 1, 0
  %v1421 = vsel %vm1413, 1, 0
  %v1422 = vsel %vm1414, 1, 0
  %v1423 = vsel %vm1415, 1, 0
  %v1424 = vsel %vm1416, 1, 0
  %v1425 = vsel %vm1417, 1, 0
  %v1426 = vsel %vm1418, 1, 0
  %v1427 = vsel %vm1419, 1, 0
  %v1428 = vadd.s32 %v1380, %v1420
  %v1429 = vadd.s32 %v1381, %v1421
  %v1430 = vadd.s32 %v1382, %v1422
  %v1431 = vadd.s32 %v1383, %v1423
  %v1432 = vadd.s32 %v1384, %v1424
  %v1433 = vadd.s32 %v1385, %v1425
  %v1434 = vadd.s32 %v1386, %v1426
  %v1435 = vadd.s32 %v1387, %v1427
  %1436 = vset.pattern.permute.xlu0 7
  %1437 = vperm.xlu0 %1436, %v1098
  %v1438 = vpop.permute.xlu0 %1437
  %1439 = vset.pattern.permute.xlu0 7
  %1440 = vperm.xlu0 %1439, %v1099
  %v1441 = vpop.permute.xlu0 %1440
  %1442 = vset.pattern.permute.xlu0 7
  %1443 = vperm.xlu0 %1442, %v1100
  %v1444 = vpop.permute.xlu0 %1443
  %1445 = vset.pattern.permute.xlu0 7
  %1446 = vperm.xlu0 %1445, %v1101
  %v1447 = vpop.permute.xlu0 %1446
  %1448 = vset.pattern.permute.xlu0 7
  %1449 = vperm.xlu0 %1448, %v1102
  %v1450 = vpop.permute.xlu0 %1449
  %1451 = vset.pattern.permute.xlu0 7
  %1452 = vperm.xlu0 %1451, %v1103
  %v1453 = vpop.permute.xlu0 %1452
  %1454 = vset.pattern.permute.xlu0 7
  %1455 = vperm.xlu0 %1454, %v1104
  %v1456 = vpop.permute.xlu0 %1455
  %1457 = vset.pattern.permute.xlu0 7
  %1458 = vperm.xlu0 %1457, %v1105
  %v1459 = vpop.permute.xlu0 %1458
  %vm1460 = vcmp.eq.s32.totalorder %v1107, %v1438
  %vm1461 = vcmp.eq.s32.totalorder %v1107, %v1441
  %vm1462 = vcmp.eq.s32.totalorder %v1107, %v1444
  %vm1463 = vcmp.eq.s32.totalorder %v1107, %v1447
  %vm1464 = vcmp.eq.s32.totalorder %v1107, %v1450
  %vm1465 = vcmp.eq.s32.totalorder %v1107, %v1453
  %vm1466 = vcmp.eq.s32.totalorder %v1107, %v1456
  %vm1467 = vcmp.eq.s32.totalorder %v1107, %v1459
  %v1468 = vsel %vm1460, 1, 0
  %v1469 = vsel %vm1461, 1, 0
  %v1470 = vsel %vm1462, 1, 0
  %v1471 = vsel %vm1463, 1, 0
  %v1472 = vsel %vm1464, 1, 0
  %v1473 = vsel %vm1465, 1, 0
  %v1474 = vsel %vm1466, 1, 0
  %v1475 = vsel %vm1467, 1, 0
  %v1476 = vadd.s32 %v1428, %v1468
  %v1477 = vadd.s32 %v1429, %v1469
  %v1478 = vadd.s32 %v1430, %v1470
  %v1479 = vadd.s32 %v1431, %v1471
  %v1480 = vadd.s32 %v1432, %v1472
  %v1481 = vadd.s32 %v1433, %v1473
  %v1482 = vadd.s32 %v1434, %v1474
  %v1483 = vadd.s32 %v1435, %v1475
  %vm1484 = vcmask 31744
  %v1485 = vsel %vm1484, %v1476, 2147483648
  %v1486 = vand.u32 %v1485, 65535
  %v1487 = vshra.s32 %v1485, 16
  %v1488 = vcvt.s32.f32 %v1486
  %v1489 = vcvt.s32.f32 %v1487
  %1490 = vmax.xlane.f32.xlu0 %v1489
  %v1491 = vpop.xlane.xlu0 %1490
  %vm1492 = vcmp.eq.f32.partialorder %v1489, %v1491
  %v1493 = vsel %vm1492, %v1488, -inf
  %1494 = vmax.xlane.f32.xlu0 %v1493
  %v1495 = vpop.xlane.xlu0 %1494
  %v1496 = vcvt.f32.s32 %v1495
  %v1497 = vcvt.f32.s32 %v1491
  %v1498 = vshll.u32 %v1497, 16
  %v1499 = vadd.s32 %v1498, %v1496
  %v1500 = vsel %vm1484, %v1477, 2147483648
  %v1501 = vand.u32 %v1500, 65535
  %v1502 = vshra.s32 %v1500, 16
  %v1503 = vcvt.s32.f32 %v1501
  %v1504 = vcvt.s32.f32 %v1502
  %1505 = vmax.xlane.f32.xlu0 %v1504
  %v1506 = vpop.xlane.xlu0 %1505
  %vm1507 = vcmp.eq.f32.partialorder %v1504, %v1506
  %v1508 = vsel %vm1507, %v1503, -inf
  %1509 = vmax.xlane.f32.xlu0 %v1508
  %v1510 = vpop.xlane.xlu0 %1509
  %v1511 = vcvt.f32.s32 %v1510
  %v1512 = vcvt.f32.s32 %v1506
  %v1513 = vshll.u32 %v1512, 16
  %v1514 = vadd.s32 %v1513, %v1511
  %v1515 = vsel %vm1484, %v1478, 2147483648
  %v1516 = vand.u32 %v1515, 65535
  %v1517 = vshra.s32 %v1515, 16
  %v1518 = vcvt.s32.f32 %v1516
  %v1519 = vcvt.s32.f32 %v1517
  %1520 = vmax.xlane.f32.xlu0 %v1519
  %v1521 = vpop.xlane.xlu0 %1520
  %vm1522 = vcmp.eq.f32.partialorder %v1519, %v1521
  %v1523 = vsel %vm1522, %v1518, -inf
  %1524 = vmax.xlane.f32.xlu0 %v1523
  %v1525 = vpop.xlane.xlu0 %1524
  %v1526 = vcvt.f32.s32 %v1525
  %v1527 = vcvt.f32.s32 %v1521
  %v1528 = vshll.u32 %v1527, 16
  %v1529 = vadd.s32 %v1528, %v1526
  %v1530 = vsel %vm1484, %v1479, 2147483648
  %v1531 = vand.u32 %v1530, 65535
  %v1532 = vshra.s32 %v1530, 16
  %v1533 = vcvt.s32.f32 %v1531
  %v1534 = vcvt.s32.f32 %v1532
  %1535 = vmax.xlane.f32.xlu0 %v1534
  %v1536 = vpop.xlane.xlu0 %1535
  %vm1537 = vcmp.eq.f32.partialorder %v1534, %v1536
  %v1538 = vsel %vm1537, %v1533, -inf
  %1539 = vmax.xlane.f32.xlu0 %v1538
  %v1540 = vpop.xlane.xlu0 %1539
  %v1541 = vcvt.f32.s32 %v1540
  %v1542 = vcvt.f32.s32 %v1536
  %v1543 = vshll.u32 %v1542, 16
  %v1544 = vadd.s32 %v1543, %v1541
  %v1545 = vsel %vm1484, %v1480, 2147483648
  %v1546 = vand.u32 %v1545, 65535
  %v1547 = vshra.s32 %v1545, 16
  %v1548 = vcvt.s32.f32 %v1546
  %v1549 = vcvt.s32.f32 %v1547
  %1550 = vmax.xlane.f32.xlu0 %v1549
  %v1551 = vpop.xlane.xlu0 %1550
  %vm1552 = vcmp.eq.f32.partialorder %v1549, %v1551
  %v1553 = vsel %vm1552, %v1548, -inf
  %1554 = vmax.xlane.f32.xlu0 %v1553
  %v1555 = vpop.xlane.xlu0 %1554
  %v1556 = vcvt.f32.s32 %v1555
  %v1557 = vcvt.f32.s32 %v1551
  %v1558 = vshll.u32 %v1557, 16
  %v1559 = vadd.s32 %v1558, %v1556
  %v1560 = vsel %vm1484, %v1481, 2147483648
  %v1561 = vand.u32 %v1560, 65535
  %v1562 = vshra.s32 %v1560, 16
  %v1563 = vcvt.s32.f32 %v1561
  %v1564 = vcvt.s32.f32 %v1562
  %1565 = vmax.xlane.f32.xlu0 %v1564
  %v1566 = vpop.xlane.xlu0 %1565
  %vm1567 = vcmp.eq.f32.partialorder %v1564, %v1566
  %v1568 = vsel %vm1567, %v1563, -inf
  %1569 = vmax.xlane.f32.xlu0 %v1568
  %v1570 = vpop.xlane.xlu0 %1569
  %v1571 = vcvt.f32.s32 %v1570
  %v1572 = vcvt.f32.s32 %v1566
  %v1573 = vshll.u32 %v1572, 16
  %v1574 = vadd.s32 %v1573, %v1571
  %v1575 = vsel %vm1484, %v1482, 2147483648
  %v1576 = vand.u32 %v1575, 65535
  %v1577 = vshra.s32 %v1575, 16
  %v1578 = vcvt.s32.f32 %v1576
  %v1579 = vcvt.s32.f32 %v1577
  %1580 = vmax.xlane.f32.xlu0 %v1579
  %v1581 = vpop.xlane.xlu0 %1580
  %vm1582 = vcmp.eq.f32.partialorder %v1579, %v1581
  %v1583 = vsel %vm1582, %v1578, -inf
  %1584 = vmax.xlane.f32.xlu0 %v1583
  %v1585 = vpop.xlane.xlu0 %1584
  %v1586 = vcvt.f32.s32 %v1585
  %v1587 = vcvt.f32.s32 %v1581
  %v1588 = vshll.u32 %v1587, 16
  %v1589 = vadd.s32 %v1588, %v1586
  %v1590 = vsel %vm1484, %v1483, 2147483648
  %v1591 = vand.u32 %v1590, 65535
  %v1592 = vshra.s32 %v1590, 16
  %v1593 = vcvt.s32.f32 %v1591
  %v1594 = vcvt.s32.f32 %v1592
  %1595 = vmax.xlane.f32.xlu0 %v1594
  %v1596 = vpop.xlane.xlu0 %1595
  %vm1597 = vcmp.eq.f32.partialorder %v1594, %v1596
  %v1598 = vsel %vm1597, %v1593, -inf
  %1599 = vmax.xlane.f32.xlu0 %v1598
  %v1600 = vpop.xlane.xlu0 %1599
  %v1601 = vcvt.f32.s32 %v1600
  %v1602 = vcvt.f32.s32 %v1596
  %v1603 = vshll.u32 %v1602, 16
  %v1604 = vadd.s32 %v1603, %v1601
  %vm1605 = vcmp.eq.s32.totalorder %v1476, %v1499
  %vm1606 = vcmp.eq.s32.totalorder %v1477, %v1514
  %vm1607 = vcmp.eq.s32.totalorder %v1478, %v1529
  %vm1608 = vcmp.eq.s32.totalorder %v1479, %v1544
  %vm1609 = vcmp.eq.s32.totalorder %v1480, %v1559
  %vm1610 = vcmp.eq.s32.totalorder %v1481, %v1574
  %vm1611 = vcmp.eq.s32.totalorder %v1482, %v1589
  %vm1612 = vcmp.eq.s32.totalorder %v1483, %v1604
  %v1613 = vsel %vm1605, %v1107, 4
  %v1614 = vsel %vm1606, %v1107, 4
  %v1615 = vsel %vm1607, %v1107, 4
  %v1616 = vsel %vm1608, %v1107, 4
  %v1617 = vsel %vm1609, %v1107, 4
  %v1618 = vsel %vm1610, %v1107, 4
  %v1619 = vsel %vm1611, %v1107, 4
  %v1620 = vsel %vm1612, %v1107, 4
  %v1621 = vsel %vm1484, %v1613, 2147483647
  %v1622 = vand.u32 %v1621, 65535
  %v1623 = vshra.s32 %v1621, 16
  %v1624 = vcvt.s32.f32 %v1622
  %v1625 = vcvt.s32.f32 %v1623
  %1626 = vmin.xlane.f32.xlu0 %v1625
  %v1627 = vpop.xlane.xlu0 %1626
  %vm1628 = vcmp.eq.f32.partialorder %v1625, %v1627
  %v1629 = vsel %vm1628, %v1624, inf
  %1630 = vmin.xlane.f32.xlu0 %v1629
  %v1631 = vpop.xlane.xlu0 %1630
  %v1632 = vcvt.f32.s32 %v1631
  %v1633 = vcvt.f32.s32 %v1627
  %v1634 = vshll.u32 %v1633, 16
  %v1635 = vadd.s32 %v1634, %v1632
  %v1636 = vsel %vm1484, %v1614, 2147483647
  %v1637 = vand.u32 %v1636, 65535
  %v1638 = vshra.s32 %v1636, 16
  %v1639 = vcvt.s32.f32 %v1637
  %v1640 = vcvt.s32.f32 %v1638
  %1641 = vmin.xlane.f32.xlu0 %v1640
  %v1642 = vpop.xlane.xlu0 %1641
  %vm1643 = vcmp.eq.f32.partialorder %v1640, %v1642
  %v1644 = vsel %vm1643, %v1639, inf
  %1645 = vmin.xlane.f32.xlu0 %v1644
  %v1646 = vpop.xlane.xlu0 %1645
  %v1647 = vcvt.f32.s32 %v1646
  %v1648 = vcvt.f32.s32 %v1642
  %v1649 = vshll.u32 %v1648, 16
  %v1650 = vadd.s32 %v1649, %v1647
  %v1651 = vsel %vm1484, %v1615, 2147483647
  %v1652 = vand.u32 %v1651, 65535
  %v1653 = vshra.s32 %v1651, 16
  %v1654 = vcvt.s32.f32 %v1652
  %v1655 = vcvt.s32.f32 %v1653
  %1656 = vmin.xlane.f32.xlu0 %v1655
  %v1657 = vpop.xlane.xlu0 %1656
  %vm1658 = vcmp.eq.f32.partialorder %v1655, %v1657
  %v1659 = vsel %vm1658, %v1654, inf
  %1660 = vmin.xlane.f32.xlu0 %v1659
  %v1661 = vpop.xlane.xlu0 %1660
  %v1662 = vcvt.f32.s32 %v1661
  %v1663 = vcvt.f32.s32 %v1657
  %v1664 = vshll.u32 %v1663, 16
  %v1665 = vadd.s32 %v1664, %v1662
  %v1666 = vsel %vm1484, %v1616, 2147483647
  %v1667 = vand.u32 %v1666, 65535
  %v1668 = vshra.s32 %v1666, 16
  %v1669 = vcvt.s32.f32 %v1667
  %v1670 = vcvt.s32.f32 %v1668
  %1671 = vmin.xlane.f32.xlu0 %v1670
  %v1672 = vpop.xlane.xlu0 %1671
  %vm1673 = vcmp.eq.f32.partialorder %v1670, %v1672
  %v1674 = vsel %vm1673, %v1669, inf
  %1675 = vmin.xlane.f32.xlu0 %v1674
  %v1676 = vpop.xlane.xlu0 %1675
  %v1677 = vcvt.f32.s32 %v1676
  %v1678 = vcvt.f32.s32 %v1672
  %v1679 = vshll.u32 %v1678, 16
  %v1680 = vadd.s32 %v1679, %v1677
  %v1681 = vsel %vm1484, %v1617, 2147483647
  %v1682 = vand.u32 %v1681, 65535
  %v1683 = vshra.s32 %v1681, 16
  %v1684 = vcvt.s32.f32 %v1682
  %v1685 = vcvt.s32.f32 %v1683
  %1686 = vmin.xlane.f32.xlu0 %v1685
  %v1687 = vpop.xlane.xlu0 %1686
  %vm1688 = vcmp.eq.f32.partialorder %v1685, %v1687
  %v1689 = vsel %vm1688, %v1684, inf
  %1690 = vmin.xlane.f32.xlu0 %v1689
  %v1691 = vpop.xlane.xlu0 %1690
  %v1692 = vcvt.f32.s32 %v1691
  %v1693 = vcvt.f32.s32 %v1687
  %v1694 = vshll.u32 %v1693, 16
  %v1695 = vadd.s32 %v1694, %v1692
  %v1696 = vsel %vm1484, %v1618, 2147483647
  %v1697 = vand.u32 %v1696, 65535
  %v1698 = vshra.s32 %v1696, 16
  %v1699 = vcvt.s32.f32 %v1697
  %v1700 = vcvt.s32.f32 %v1698
  %1701 = vmin.xlane.f32.xlu0 %v1700
  %v1702 = vpop.xlane.xlu0 %1701
  %vm1703 = vcmp.eq.f32.partialorder %v1700, %v1702
  %v1704 = vsel %vm1703, %v1699, inf
  %1705 = vmin.xlane.f32.xlu0 %v1704
  %v1706 = vpop.xlane.xlu0 %1705
  %v1707 = vcvt.f32.s32 %v1706
  %v1708 = vcvt.f32.s32 %v1702
  %v1709 = vshll.u32 %v1708, 16
  %v1710 = vadd.s32 %v1709, %v1707
  %v1711 = vsel %vm1484, %v1619, 2147483647
  %v1712 = vand.u32 %v1711, 65535
  %v1713 = vshra.s32 %v1711, 16
  %v1714 = vcvt.s32.f32 %v1712
  %v1715 = vcvt.s32.f32 %v1713
  %1716 = vmin.xlane.f32.xlu0 %v1715
  %v1717 = vpop.xlane.xlu0 %1716
  %vm1718 = vcmp.eq.f32.partialorder %v1715, %v1717
  %v1719 = vsel %vm1718, %v1714, inf
  %1720 = vmin.xlane.f32.xlu0 %v1719
  %v1721 = vpop.xlane.xlu0 %1720
  %v1722 = vcvt.f32.s32 %v1721
  %v1723 = vcvt.f32.s32 %v1717
  %v1724 = vshll.u32 %v1723, 16
  %v1725 = vadd.s32 %v1724, %v1722
  %v1726 = vsel %vm1484, %v1620, 2147483647
  %v1727 = vand.u32 %v1726, 65535
  %v1728 = vshra.s32 %v1726, 16
  %v1729 = vcvt.s32.f32 %v1727
  %v1730 = vcvt.s32.f32 %v1728
  %1731 = vmin.xlane.f32.xlu0 %v1730
  %v1732 = vpop.xlane.xlu0 %1731
  %vm1733 = vcmp.eq.f32.partialorder %v1730, %v1732
  %v1734 = vsel %vm1733, %v1729, inf
  %1735 = vmin.xlane.f32.xlu0 %v1734
  %v1736 = vpop.xlane.xlu0 %1735
  %v1737 = vcvt.f32.s32 %v1736
  %v1738 = vcvt.f32.s32 %v1732
  %v1739 = vshll.u32 %v1738, 16
  %v1740 = vadd.s32 %v1739, %v1737
  %vm1741 = vcmask 7168
  %1742 = vst.msk [vmem:[%s6] sm:$0xff] %vm1741, %v1635
  %1743 = vst.msk [vmem:[%s6 + $0x8] sm:$0xff] %vm1741, %v1650
  %1744 = vst.msk [vmem:[%s6 + $0x10] sm:$0xff] %vm1741, %v1665
  %1745 = vst.msk [vmem:[%s6 + $0x18] sm:$0xff] %vm1741, %v1680
  %1746 = vst.msk [vmem:[%s6 + $0x20] sm:$0xff] %vm1741, %v1695
  %1747 = vst.msk [vmem:[%s6 + $0x28] sm:$0xff] %vm1741, %v1710
  %1748 = vst.msk [vmem:[%s6 + $0x30] sm:$0xff] %vm1741, %v1725
  %1749 = vst.msk [vmem:[%s6 + $0x38] sm:$0xff] %vm1741, %v1740
  // Predicated region
  $region26: #{deep_forest_forward.1} parent=0 // pred_check
    _
  $region27: #{deep_forest_forward.1} parent=0 // pred_check_branch
    %1751 = sbr.rel (0) target = $region29
  $region28: #{deep_forest_forward.1} parent=0 // pred_region
    _
  $region29: #{deep_forest_forward.1} parent=0 // pred_fallthru
    _
  // Predicated region
  $region30: #{deep_forest_forward.1} parent=0 // pred_check
    _
  $region31: #{deep_forest_forward.1} parent=0 // pred_check_branch
    %1753 = sbr.rel (0) target = $region33
  $region32: #{deep_forest_forward.1} parent=0 // pred_region
    _
  $region33: #{deep_forest_forward.1} parent=0 // pred_fallthru
    _

</llo_original>
